<compile_context>
chip_gen: v7x
topology: tpu7x:2x2x1
jax: 0.10.0
libtpu: 0.0.40
codegen_flags: <defaults>
</compile_context>

<pallas_src>
import functools

import numpy as np

import jax
import jax.numpy as jnp
from jax import lax
from jax.experimental import pallas as pl
from jax.experimental.pallas import tpu as pltpu


def _round_up(x, m):
    return ((x + m - 1) // m) * m


def _round16(c):
    # bf16 packs 16 rows per sublane tile -> round channel counts to 16.
    return _round_up(c, 16)


# ----------------------------- Pallas kernel ---------------------------------

def _fused_conv_block_kernel(*refs, n_layers, taps, cins, couts, R, row_tile,
                             pad_off, pad_rows, has_res, relus):
    """One batch item of a fused stack of SingleConv3D layers.

    refs layout:
      [0]      x_ref       (1, Cin0, R)          bf16 flat (D*H*W) activation
      [1]      masks_ref   (9, 1, R)             bf16 h/w border masks (kh,kw)
      [2+3i]   w_ref_i     (Couti, 27*Cini)      bf16
      [3+3i]   scale_ref_i (Couti, 1)            f32  gamma / sqrt(var + eps)
      [4+3i]   shift_ref_i (Couti, 1)            f32  beta + (bias - mean)*scale
      [2+3n]   o_ref       (1, CoutLast, R)      bf16
      scratch: buf_a, buf_b (Cbuf, buf_cols)     bf16 ping-pong halo'd acts
               skip         (Cout0, R)           bf16 layer-0 output (residual)
    """
    x_ref, masks_ref = refs[0], refs[1]
    w_refs = [refs[2 + 3 * i] for i in range(n_layers)]
    sc_refs = [refs[3 + 3 * i] for i in range(n_layers)]
    sh_refs = [refs[4 + 3 * i] for i in range(n_layers)]
    o_ref = refs[2 + 3 * n_layers]
    buf_a, buf_b, skip = refs[3 + 3 * n_layers: 6 + 3 * n_layers]

    # Zero halo == the conv's zero padding along d (h/w handled by masks).
    buf_a[...] = jnp.zeros_like(buf_a)
    buf_b[...] = jnp.zeros_like(buf_b)
    # Stage the input in VMEM (no host-side jnp.pad/stack, no extra HBM copy).
    buf_a[0:cins[0], pad_off:pad_off + R] = x_ref[0]

    masks = masks_ref[...]                                   # (9, 1, R) bf16
    src, dst = buf_a, buf_b
    n_tiles = R // row_tile
    for li in range(n_layers):
        cin, cout = cins[li], couts[li]
        w = w_refs[li][...]                                  # (Cout, 27*Cin)
        scale = sc_refs[li][...]                             # (Cout, 1) f32
        shift = sh_refs[li][...]                             # (Cout, 1) f32
        last = li == n_layers - 1
        for t in range(n_tiles):
            r0 = t * row_tile
            c0 = pad_off + r0
            # One halo'd window load, then 27 static bf16 slices (im2col taps).
            xw = src[0:cin, c0 - pad_rows:c0 + row_tile + pad_rows]
            pieces = []
            for dr, mid in taps:
                p = xw[:, pad_rows + dr:pad_rows + dr + row_tile]
                if mid != 4:            # center tap never crosses an h/w edge
                    p = p * masks[mid, :, r0:r0 + row_tile]
                pieces.append(p)
            patch = jnp.concatenate(pieces, axis=0)          # (27*Cin, TR) bf16
            acc = jnp.dot(w, patch, preferred_element_type=jnp.float32)
            y = acc * scale + shift                          # folded BN + bias
            if last and has_res:
                y = y + skip[0:cout, r0:r0 + row_tile].astype(jnp.float32)
            if relus[li]:
                y = jnp.maximum(y, 0.0)                      # ReLU
            yb = y.astype(jnp.bfloat16)
            if li == 0 and has_res:
                skip[0:cout, r0:r0 + row_tile] = yb
            if last:
                o_ref[0, 0:cout, r0:r0 + row_tile] = yb
            else:
                dst[0:cout, c0:c0 + row_tile] = yb
        src, dst = dst, src


# ----------------------------- wrappers ---------------------------------------

def _edge_masks(spatial):
    """(9, 1, R) bf16 masks: mask[kh*3+kw, 0, r] = 1 iff the (kh, kw) tap of
    output row r stays inside the H/W extent (d handled by the zero halo)."""
    D, H, W = spatial
    R = D * H * W
    r = np.arange(R)
    w = r % W
    h = (r // W) % H
    masks = np.zeros((9, 1, R), np.float32)
    for kh in range(3):
        mh = np.ones(R, bool) if kh == 1 else (h >= 1 if kh == 0 else h <= H - 2)
        for kw in range(3):
            mw = np.ones(R, bool) if kw == 1 else (w >= 1 if kw == 0 else w <= W - 2)
            masks[kh * 3 + kw, 0] = (mh & mw)
    return jnp.asarray(masks, dtype=jnp.bfloat16)


def _pick_row_tile(R, cin_p, budget=4 << 20):
    """Largest row tile TR | R with the (27*Cin, TR) bf16 patch under budget;
    prefer lane-dense (multiple of 128) tiles so stores stay unmasked."""
    cands = [t for t in range(R, 0, -1)
             if R % t == 0 and (t % 128 == 0 or t == R)]
    for t in cands:
        if 27 * cin_p * t * 2 <= budget:
            return t
    return cands[-1]


def fused_conv_block(x, spatial, layers, has_res, relus=None):
    """Run a stack of SingleConv3D layers (conv3x3x3 pad=1 + folded BN + ReLU)
    as ONE pallas_call, activations resident in VMEM.  If has_res, layer 0's
    output is added (pre-ReLU) to the last layer's output (Conv3DBlock)."""
    D, H, W = spatial
    N, cin0_p, R = x.shape
    assert R == D * H * W
    n_layers = len(layers)
    relus = tuple(relus) if relus is not None else (True,) * n_layers
    cins = [l["w"].shape[1] // 27 for l in layers]
    couts = [l["w"].shape[0] for l in layers]
    assert cins[0] == cin0_p
    if has_res:
        assert n_layers >= 2 and couts[0] == couts[-1]

    HW = H * W
    pad_rows = HW + W + 1                    # max |row shift| of a 3x3x3 tap
    pad_off = _round_up(pad_rows, 128)       # lane-aligned start of real rows
    buf_cols = _round_up(pad_off + R + pad_rows, 128)
    cbuf = max(cins + couts[:-1])            # channels ever staged in scratch
    row_tile = _pick_row_tile(R, max(cins))
    # TODO(synk): very large D*H*W (block working set beyond ~40 MiB) would
    # need a depth-tiled multi-call fallback; funcmol encoder sizes fit VMEM.

    masks = _edge_masks(spatial)
    taps = tuple(((kd - 1) * HW + (kh - 1) * W + (kw - 1), kh * 3 + kw)
                 for kd in range(3) for kh in range(3) for kw in range(3))

    in_specs = [
        pl.BlockSpec((1, cin0_p, R), lambda n: (n, 0, 0)),
        pl.BlockSpec((9, 1, R), lambda n: (0, 0, 0)),
    ]
    args = [x, masks]
    for l in layers:
        co, k = l["w"].shape
        in_specs += [pl.BlockSpec((co, k), lambda n: (0, 0)),
                     pl.BlockSpec((co, 1), lambda n: (0, 0)),
                     pl.BlockSpec((co, 1), lambda n: (0, 0))]
        args += [l["w"], l["scale"], l["shift"]]

    kernel = functools.partial(
        _fused_conv_block_kernel, n_layers=n_layers, taps=taps, cins=cins,
        couts=couts, R=R, row_tile=row_tile, pad_off=pad_off,
        pad_rows=pad_rows, has_res=has_res, relus=relus)

    return pl.pallas_call(
        kernel,
        out_shape=jax.ShapeDtypeStruct((N, couts[-1], R), jnp.bfloat16),
        grid=(N,),                                   # batch: parallel axis
        in_specs=in_specs,
        out_specs=pl.BlockSpec((1, couts[-1], R), lambda n: (n, 0, 0)),
        scratch_shapes=[
            pltpu.VMEM((cbuf, buf_cols), jnp.bfloat16),   # ping
            pltpu.VMEM((cbuf, buf_cols), jnp.bfloat16),   # pong
            pltpu.VMEM((couts[0], R), jnp.bfloat16),      # layer-0 skip
        ],
        compiler_params=pltpu.CompilerParams(
            dimension_semantics=("parallel",),
            vmem_limit_bytes=48 * 1024 * 1024),           # safe on v7x (64 MiB)
    )(*args)


def single_conv3d(x, spatial, layer, relu=True):
    """The bare PyTorch SingleConv3D (Conv3d 3x3x3 pad=1 + BN + ReLU) as one
    Pallas call; the encoder below fuses 5 of these per Conv3DBlock."""
    return fused_conv_block(x, spatial, [layer], has_res=False, relus=(relu,))


def maxpool3d_2x(x, spatial):
    # MaxPool3d(kernel=2, stride=2) on channel-first flattened activations.
    # TODO(synk): could be fused into the epilogue of the last conv of a block.
    D, H, W = spatial
    N, C, _ = x.shape
    x = x.reshape(N, C, D // 2, 2, H // 2, 2, W // 2, 2)
    x = x.max(axis=(3, 5, 7))
    sp = (D // 2, H // 2, W // 2)
    return x.reshape(N, C, sp[0] * sp[1] * sp[2]), sp


# ----------------------------- parameters -------------------------------------

def _init_single_conv(key, cin, cout, eps=1e-5):
    cin_p, cout_p = _round16(cin), _round16(cout)
    k1, k2, k3, k4 = jax.random.split(key, 4)
    w = jax.random.normal(k1, (27, cin, cout), jnp.float32) / jnp.sqrt(27.0 * cin)
    bias = 0.1 * jax.random.normal(k2, (cout,), jnp.float32)
    gamma = 1.0 + 0.1 * jax.random.normal(k3, (cout,), jnp.float32)
    beta = 0.1 * jax.random.normal(k4, (cout,), jnp.float32)
    running_mean = jnp.zeros((cout,), jnp.float32)
    running_var = jnp.ones((cout,), jnp.float32)
    # TODO(synk): BatchNorm3d is folded with inference (running) statistics,
    # not train-mode per-batch statistics.
    inv = gamma / jnp.sqrt(running_var + eps)
    scale = jnp.zeros((cout_p, 1), jnp.float32).at[:cout, 0].set(inv)
    shift = jnp.zeros((cout_p, 1), jnp.float32).at[:cout, 0].set(
        beta + (bias - running_mean) * inv)
    # Padded channels get zero weights / zero scale / zero shift -> stay zero.
    wp = jnp.zeros((27, cin_p, cout_p), jnp.float32).at[:, :cin, :cout].set(w)
    w2 = jnp.transpose(wp, (2, 0, 1)).reshape(cout_p, 27 * cin_p).astype(jnp.bfloat16)
    return {"w": w2, "scale": scale, "shift": shift}


def _block_channel_pairs(in_channels, out_channels):
    # smaller=False path of Conv3DBlock
    mids = [out_channels, out_channels // 2, out_channels // 2,
            out_channels // 2, out_channels]
    pairs = []
    for i in range(len(mids)):
        in_ch = in_channels if i == 0 else mids[i - 1]
        pairs.append((in_ch, mids[i]))
    return pairs


def init_encoder_params(key, in_channels, level_channels, bottleneck_channel):
    params = {"enc_blocks": []}
    n_blocks = len(level_channels)
    keys = jax.random.split(key, n_blocks + 2)
    prev = in_channels
    for i, out_ch in enumerate(level_channels):
        pairs = _block_channel_pairs(prev, out_ch)
        bkeys = jax.random.split(keys[i], len(pairs))
        params["enc_blocks"].append(
            [_init_single_conv(bk, ci, co) for bk, (ci, co) in zip(bkeys, pairs)])
        prev = out_ch
    pairs = _block_channel_pairs(prev, bottleneck_channel)
    bkeys = jax.random.split(keys[n_blocks], len(pairs))
    params["bottleneck"] = [_init_single_conv(bk, ci, co)
                            for bk, (ci, co) in zip(bkeys, pairs)]
    kw, kb = jax.random.split(keys[n_blocks + 1])
    params["fc_w"] = (jax.random.normal(
        kw, (bottleneck_channel, bottleneck_channel), jnp.float32)
        / jnp.sqrt(float(bottleneck_channel)))
    params["fc_b"] = 0.1 * jax.random.normal(kb, (bottleneck_channel,), jnp.float32)
    return params


# ----------------------------- forward pass -----------------------------------

def conv3d_block(x, spatial, layers, bottleneck):
    # Conv3DBlock (res_block=True, smaller=False): ONE fused pallas_call runs
    # layer0 -> layers1..3 -> layer4 (+layer0 skip, ReLU) with all inter-layer
    # activations resident in VMEM; maxpool afterwards unless bottleneck.
    res = fused_conv_block(x, spatial, layers, has_res=True)
    if bottleneck:
        return res, spatial
    return maxpool3d_2x(res, spatial)


def encoder_forward(voxels_ncdhw, params):
    N, C, D, H, W = voxels_ncdhw.shape
    cin_p = _round16(C)
    # NCDHW is already channel-first: flatten spatial, pad channels to 16 (bf16
    # sublane pack) with zeros, stream as bf16.
    x = voxels_ncdhw.reshape(N, C, D * H * W)
    x = jnp.pad(x, ((0, 0), (0, cin_p - C), (0, 0))).astype(jnp.bfloat16)
    spatial = (D, H, W)
    for layers in params["enc_blocks"]:
        x, spatial = conv3d_block(x, spatial, layers, bottleneck=False)
    x, spatial = conv3d_block(x, spatial, params["bottleneck"], bottleneck=True)
    c_true = params["fc_w"].shape[0]
    # avg_pool3d over the full extent + tiny Linear head: plain jnp (too small).
    feat = jnp.mean(x[:, :c_true, :].astype(jnp.float32), axis=2)
    return feat @ params["fc_w"] + params["fc_b"]


# ----------------------------- reference (lax.conv) ---------------------------

def _q_bf16(a):
    return a.astype(jnp.bfloat16).astype(jnp.float32)


def _ref_single_conv(x, layer, spatial, residual=None, relu=True):
    D, H, W = spatial
    N = x.shape[0]
    cout_p, k = layer["w"].shape
    cin_p = k // 27
    w = layer["w"].astype(jnp.float32).reshape(cout_p, 3, 3, 3, cin_p)
    w = jnp.transpose(w, (0, 4, 1, 2, 3))                    # (O, I, kd, kh, kw)
    y = lax.conv_general_dilated(
        x.astype(jnp.float32).reshape(N, cin_p, D, H, W), w,
        window_strides=(1, 1, 1), padding=((1, 1), (1, 1), (1, 1)),
        dimension_numbers=("NCDHW", "OIDHW", "NCDHW"),
        precision=lax.Precision.HIGHEST)
    y = y.reshape(N, cout_p, D * H * W)
    y = y * layer["scale"][None] + layer["shift"][None]
    if residual is not None:
        y = y + residual
    if relu:
        y = jnp.maximum(y, 0.0)
    return y


def _ref_block(x, spatial, layers, bottleneck):
    x0 = _q_bf16(_ref_single_conv(x, layers[0], spatial))
    h = x0
    for i in range(1, len(layers) - 1):
        h = _q_bf16(_ref_single_conv(h, layers[i], spatial))
    res = _q_bf16(_ref_single_conv(h, layers[-1], spatial, residual=x0))
    if bottleneck:
        return res, spatial
    return maxpool3d_2x(res, spatial)


def encoder_forward_ref(voxels, params):
    N, C, D, H, W = voxels.shape
    cin_p = _round16(C)
    x = jnp.pad(voxels.reshape(N, C, D * H * W), ((0, 0), (0, cin_p - C), (0, 0)))
    x = _q_bf16(x)
    spatial = (D, H, W)
    for layers in params["enc_blocks"]:
        x, spatial = _ref_block(x, spatial, layers, bottleneck=False)
    x, spatial = _ref_block(x, spatial, params["bottleneck"], bottleneck=True)
    c_true = params["fc_w"].shape[0]
    feat = jnp.mean(x[:, :c_true, :], axis=2)
    return feat @ params["fc_w"] + params["fc_b"]


# ----------------------------- main --------------------------------------------

if __name__ == "__main__":
    key = jax.random.PRNGKey(0)
    N, Cin, S = 2, 4, 8                      # batch, in_channels, D=H=W
    level_channels = [8, 16, 32]
    bottleneck_channel = 64

    kx, kp = jax.random.split(key)
    voxels = jax.random.normal(kx, (N, Cin, S, S, S), jnp.float32)  # NCDHW
    params = init_encoder_params(kp, Cin, level_channels, bottleneck_channel)

    # --- standalone SingleConv3D (the module itself) vs lax.conv reference ---
    spatial = (S, S, S)
    cin_p = _round16(Cin)
    x0 = voxels.reshape(N, Cin, S * S * S)
    x0 = jnp.pad(x0, ((0, 0), (0, cin_p - Cin), (0, 0))).astype(jnp.bfloat16)
    layer0 = params["enc_blocks"][0][0]
    y_k = jax.block_until_ready(single_conv3d(x0, spatial, layer0))
    y_r = _ref_single_conv(x0, layer0, spatial)
    assert bool(jnp.allclose(y_k.astype(jnp.float32), y_r, rtol=2e-2, atol=2e-2)), (
        "single_conv3d mismatch", float(jnp.max(jnp.abs(y_k.astype(jnp.float32) - y_r))))

    # --- full encoder forward (fused-block kernels) ---------------------------
    fwd = jax.jit(encoder_forward)
    out = jax.block_until_ready(fwd(voxels, params))
    assert out.shape == (N, bottleneck_channel), out.shape
    assert bool(jnp.all(jnp.isfinite(out)))

    ref = encoder_forward_ref(voxels, params)
    assert bool(jnp.allclose(out, ref, rtol=3e-2, atol=3e-2)), (
        "encoder mismatch", float(jnp.max(jnp.abs(out - ref))))
    print("KERNEL_OK")
</pallas_src>

<mosaic_0001>
module attributes {stable_mosaic.version = 11 : i64} {
  func.func @_fused_conv_block_kernel(%arg0: i32, %arg1: memref<1x16x512xbf16, #tpu.memory_space<vmem>>, %arg2: memref<9x1x512xbf16, #tpu.memory_space<vmem>>, %arg3: memref<16x432xbf16, #tpu.memory_space<vmem>>, %arg4: memref<16x1xf32, #tpu.memory_space<vmem>>, %arg5: memref<16x1xf32, #tpu.memory_space<vmem>>, %arg6: memref<1x16x512xbf16, #tpu.memory_space<vmem>>, %arg7: memref<16x768xbf16, #tpu.memory_space<vmem>>, %arg8: memref<16x768xbf16, #tpu.memory_space<vmem>>, %arg9: memref<16x512xbf16, #tpu.memory_space<vmem>>) attributes {dimension_semantics = [#tpu.dimension_semantics<parallel>], iteration_bounds = array<i64: 2>, scalar_prefetch = 0 : i64, scratch_operands = 3 : i64, tpu.core_type = #tpu.core_type<tc>, window_params = [{transform_indices = @transform_0, window_bounds = array<i64: 1, 16, 512>}, {pipeline_mode = #tpu.pipeline_mode<synchronous>, transform_indices = @transform_1, window_bounds = array<i64: 9, 1, 512>}, {pipeline_mode = #tpu.pipeline_mode<synchronous>, transform_indices = @transform_2, window_bounds = array<i64: 16, 432>}, {pipeline_mode = #tpu.pipeline_mode<synchronous>, transform_indices = @transform_3, window_bounds = array<i64: 16, 1>}, {pipeline_mode = #tpu.pipeline_mode<synchronous>, transform_indices = @transform_4, window_bounds = array<i64: 16, 1>}, {transform_indices = @transform_5, window_bounds = array<i64: 1, 16, 512>}]} {
    %cst = arith.constant 0.000000e+00 : bf16
    %0 = vector.broadcast %cst : bf16 to vector<16x768xbf16>
    %c0 = arith.constant 0 : index
    %c0_0 = arith.constant 0 : index
    %1 = vector.load %arg7[%c0, %c0_0] : memref<16x768xbf16, #tpu.memory_space<vmem>>, vector<16x768xbf16>
    tpu.vector_store %arg7[%c0, %c0_0], %0 {strides = array<i32>} : memref<16x768xbf16, #tpu.memory_space<vmem>>, vector<16x768xbf16>,
    %cst_1 = arith.constant 0.000000e+00 : bf16
    %2 = vector.broadcast %cst_1 : bf16 to vector<16x768xbf16>
    %c0_2 = arith.constant 0 : index
    %c0_3 = arith.constant 0 : index
    %3 = vector.load %arg8[%c0_2, %c0_3] : memref<16x768xbf16, #tpu.memory_space<vmem>>, vector<16x768xbf16>
    tpu.vector_store %arg8[%c0_2, %c0_3], %2 {strides = array<i32>} : memref<16x768xbf16, #tpu.memory_space<vmem>>, vector<16x768xbf16>,
    %c0_4 = arith.constant 0 : index
    %c0_5 = arith.constant 0 : index
    %c0_6 = arith.constant 0 : index
    %4 = vector.load %arg1[%c0_4, %c0_5, %c0_6] : memref<1x16x512xbf16, #tpu.memory_space<vmem>>, vector<1x16x512xbf16>
    %5 = vector.shape_cast %4 : vector<1x16x512xbf16> to vector<16x512xbf16>
    %c0_7 = arith.constant 0 : index
    %c128 = arith.constant 128 : index
    %6 = vector.load %arg7[%c0_7, %c128] : memref<16x768xbf16, #tpu.memory_space<vmem>>, vector<16x512xbf16>
    tpu.vector_store %arg7[%c0_7, %c128], %5 {strides = array<i32>} : memref<16x768xbf16, #tpu.memory_space<vmem>>, vector<16x512xbf16>,
    %c0_8 = arith.constant 0 : index
    %c0_9 = arith.constant 0 : index
    %c0_10 = arith.constant 0 : index
    %7 = vector.load %arg2[%c0_8, %c0_9, %c0_10] : memref<9x1x512xbf16, #tpu.memory_space<vmem>>, vector<9x1x512xbf16>
    %c0_11 = arith.constant 0 : index
    %c0_12 = arith.constant 0 : index
    %8 = vector.load %arg3[%c0_11, %c0_12] : memref<16x432xbf16, #tpu.memory_space<vmem>>, vector<16x432xbf16>
    %c0_13 = arith.constant 0 : index
    %c0_14 = arith.constant 0 : index
    %9 = vector.load %arg4[%c0_13, %c0_14] : memref<16x1xf32, #tpu.memory_space<vmem>>, vector<16x1xf32>
    %c0_15 = arith.constant 0 : index
    %c0_16 = arith.constant 0 : index
    %10 = vector.load %arg5[%c0_15, %c0_16] : memref<16x1xf32, #tpu.memory_space<vmem>>, vector<16x1xf32>
    %c0_17 = arith.constant 0 : index
    %c55 = arith.constant 55 : index
    %11 = vector.load %arg7[%c0_17, %c55] : memref<16x768xbf16, #tpu.memory_space<vmem>>, vector<16x658xbf16>
    %12 = vector.extract_strided_slice %11 {offsets = [0, 0], sizes = [16, 512], strides = [1, 1]} : vector<16x658xbf16> to vector<16x512xbf16>
    %13 = vector.extract_strided_slice %7 {offsets = [0, 0, 0], sizes = [1, 1, 512], strides = [1, 1, 1]} : vector<9x1x512xbf16> to vector<1x1x512xbf16>
    %14 = vector.shape_cast %13 : vector<1x1x512xbf16> to vector<1x512xbf16>
    %15 = vector.broadcast %14 : vector<1x512xbf16> to vector<16x512xbf16>
    %16 = arith.mulf %12, %15 : vector<16x512xbf16>
    %17 = vector.extract_strided_slice %11 {offsets = [0, 1], sizes = [16, 512], strides = [1, 1]} : vector<16x658xbf16> to vector<16x512xbf16>
    %18 = vector.extract_strided_slice %7 {offsets = [1, 0, 0], sizes = [1, 1, 512], strides = [1, 1, 1]} : vector<9x1x512xbf16> to vector<1x1x512xbf16>
    %19 = vector.shape_cast %18 : vector<1x1x512xbf16> to vector<1x512xbf16>
    %20 = vector.broadcast %19 : vector<1x512xbf16> to vector<16x512xbf16>
    %21 = arith.mulf %17, %20 : vector<16x512xbf16>
    %22 = vector.extract_strided_slice %11 {offsets = [0, 2], sizes = [16, 512], strides = [1, 1]} : vector<16x658xbf16> to vector<16x512xbf16>
    %23 = vector.extract_strided_slice %7 {offsets = [2, 0, 0], sizes = [1, 1, 512], strides = [1, 1, 1]} : vector<9x1x512xbf16> to vector<1x1x512xbf16>
    %24 = vector.shape_cast %23 : vector<1x1x512xbf16> to vector<1x512xbf16>
    %25 = vector.broadcast %24 : vector<1x512xbf16> to vector<16x512xbf16>
    %26 = arith.mulf %22, %25 : vector<16x512xbf16>
    %27 = vector.extract_strided_slice %11 {offsets = [0, 8], sizes = [16, 512], strides = [1, 1]} : vector<16x658xbf16> to vector<16x512xbf16>
    %28 = vector.extract_strided_slice %7 {offsets = [3, 0, 0], sizes = [1, 1, 512], strides = [1, 1, 1]} : vector<9x1x512xbf16> to vector<1x1x512xbf16>
    %29 = vector.shape_cast %28 : vector<1x1x512xbf16> to vector<1x512xbf16>
    %30 = vector.broadcast %29 : vector<1x512xbf16> to vector<16x512xbf16>
    %31 = arith.mulf %27, %30 : vector<16x512xbf16>
    %32 = vector.extract_strided_slice %11 {offsets = [0, 9], sizes = [16, 512], strides = [1, 1]} : vector<16x658xbf16> to vector<16x512xbf16>
    %33 = vector.extract_strided_slice %11 {offsets = [0, 10], sizes = [16, 512], strides = [1, 1]} : vector<16x658xbf16> to vector<16x512xbf16>
    %34 = vector.extract_strided_slice %7 {offsets = [5, 0, 0], sizes = [1, 1, 512], strides = [1, 1, 1]} : vector<9x1x512xbf16> to vector<1x1x512xbf16>
    %35 = vector.shape_cast %34 : vector<1x1x512xbf16> to vector<1x512xbf16>
    %36 = vector.broadcast %35 : vector<1x512xbf16> to vector<16x512xbf16>
    %37 = arith.mulf %33, %36 : vector<16x512xbf16>
    %38 = vector.extract_strided_slice %11 {offsets = [0, 16], sizes = [16, 512], strides = [1, 1]} : vector<16x658xbf16> to vector<16x512xbf16>
    %39 = vector.extract_strided_slice %7 {offsets = [6, 0, 0], sizes = [1, 1, 512], strides = [1, 1, 1]} : vector<9x1x512xbf16> to vector<1x1x512xbf16>
    %40 = vector.shape_cast %39 : vector<1x1x512xbf16> to vector<1x512xbf16>
    %41 = vector.broadcast %40 : vector<1x512xbf16> to vector<16x512xbf16>
    %42 = arith.mulf %38, %41 : vector<16x512xbf16>
    %43 = vector.extract_strided_slice %11 {offsets = [0, 17], sizes = [16, 512], strides = [1, 1]} : vector<16x658xbf16> to vector<16x512xbf16>
    %44 = vector.extract_strided_slice %7 {offsets = [7, 0, 0], sizes = [1, 1, 512], strides = [1, 1, 1]} : vector<9x1x512xbf16> to vector<1x1x512xbf16>
    %45 = vector.shape_cast %44 : vector<1x1x512xbf16> to vector<1x512xbf16>
    %46 = vector.broadcast %45 : vector<1x512xbf16> to vector<16x512xbf16>
    %47 = arith.mulf %43, %46 : vector<16x512xbf16>
    %48 = vector.extract_strided_slice %11 {offsets = [0, 18], sizes = [16, 512], strides = [1, 1]} : vector<16x658xbf16> to vector<16x512xbf16>
    %49 = vector.extract_strided_slice %7 {offsets = [8, 0, 0], sizes = [1, 1, 512], strides = [1, 1, 1]} : vector<9x1x512xbf16> to vector<1x1x512xbf16>
    %50 = vector.shape_cast %49 : vector<1x1x512xbf16> to vector<1x512xbf16>
    %51 = vector.broadcast %50 : vector<1x512xbf16> to vector<16x512xbf16>
    %52 = arith.mulf %48, %51 : vector<16x512xbf16>
    %53 = vector.extract_strided_slice %11 {offsets = [0, 64], sizes = [16, 512], strides = [1, 1]} : vector<16x658xbf16> to vector<16x512xbf16>
    %54 = vector.extract_strided_slice %7 {offsets = [0, 0, 0], sizes = [1, 1, 512], strides = [1, 1, 1]} : vector<9x1x512xbf16> to vector<1x1x512xbf16>
    %55 = vector.shape_cast %54 : vector<1x1x512xbf16> to vector<1x512xbf16>
    %56 = vector.broadcast %55 : vector<1x512xbf16> to vector<16x512xbf16>
    %57 = arith.mulf %53, %56 : vector<16x512xbf16>
    %58 = vector.extract_strided_slice %11 {offsets = [0, 65], sizes = [16, 512], strides = [1, 1]} : vector<16x658xbf16> to vector<16x512xbf16>
    %59 = vector.extract_strided_slice %7 {offsets = [1, 0, 0], sizes = [1, 1, 512], strides = [1, 1, 1]} : vector<9x1x512xbf16> to vector<1x1x512xbf16>
    %60 = vector.shape_cast %59 : vector<1x1x512xbf16> to vector<1x512xbf16>
    %61 = vector.broadcast %60 : vector<1x512xbf16> to vector<16x512xbf16>
    %62 = arith.mulf %58, %61 : vector<16x512xbf16>
    %63 = vector.extract_strided_slice %11 {offsets = [0, 66], sizes = [16, 512], strides = [1, 1]} : vector<16x658xbf16> to vector<16x512xbf16>
    %64 = vector.extract_strided_slice %7 {offsets = [2, 0, 0], sizes = [1, 1, 512], strides = [1, 1, 1]} : vector<9x1x512xbf16> to vector<1x1x512xbf16>
    %65 = vector.shape_cast %64 : vector<1x1x512xbf16> to vector<1x512xbf16>
    %66 = vector.broadcast %65 : vector<1x512xbf16> to vector<16x512xbf16>
    %67 = arith.mulf %63, %66 : vector<16x512xbf16>
    %68 = vector.extract_strided_slice %11 {offsets = [0, 72], sizes = [16, 512], strides = [1, 1]} : vector<16x658xbf16> to vector<16x512xbf16>
    %69 = vector.extract_strided_slice %7 {offsets = [3, 0, 0], sizes = [1, 1, 512], strides = [1, 1, 1]} : vector<9x1x512xbf16> to vector<1x1x512xbf16>
    %70 = vector.shape_cast %69 : vector<1x1x512xbf16> to vector<1x512xbf16>
    %71 = vector.broadcast %70 : vector<1x512xbf16> to vector<16x512xbf16>
    %72 = arith.mulf %68, %71 : vector<16x512xbf16>
    %73 = vector.extract_strided_slice %11 {offsets = [0, 73], sizes = [16, 512], strides = [1, 1]} : vector<16x658xbf16> to vector<16x512xbf16>
    %74 = vector.extract_strided_slice %11 {offsets = [0, 74], sizes = [16, 512], strides = [1, 1]} : vector<16x658xbf16> to vector<16x512xbf16>
    %75 = vector.extract_strided_slice %7 {offsets = [5, 0, 0], sizes = [1, 1, 512], strides = [1, 1, 1]} : vector<9x1x512xbf16> to vector<1x1x512xbf16>
    %76 = vector.shape_cast %75 : vector<1x1x512xbf16> to vector<1x512xbf16>
    %77 = vector.broadcast %76 : vector<1x512xbf16> to vector<16x512xbf16>
    %78 = arith.mulf %74, %77 : vector<16x512xbf16>
    %79 = vector.extract_strided_slice %11 {offsets = [0, 80], sizes = [16, 512], strides = [1, 1]} : vector<16x658xbf16> to vector<16x512xbf16>
    %80 = vector.extract_strided_slice %7 {offsets = [6, 0, 0], sizes = [1, 1, 512], strides = [1, 1, 1]} : vector<9x1x512xbf16> to vector<1x1x512xbf16>
    %81 = vector.shape_cast %80 : vector<1x1x512xbf16> to vector<1x512xbf16>
    %82 = vector.broadcast %81 : vector<1x512xbf16> to vector<16x512xbf16>
    %83 = arith.mulf %79, %82 : vector<16x512xbf16>
    %84 = vector.extract_strided_slice %11 {offsets = [0, 81], sizes = [16, 512], strides = [1, 1]} : vector<16x658xbf16> to vector<16x512xbf16>
    %85 = vector.extract_strided_slice %7 {offsets = [7, 0, 0], sizes = [1, 1, 512], strides = [1, 1, 1]} : vector<9x1x512xbf16> to vector<1x1x512xbf16>
    %86 = vector.shape_cast %85 : vector<1x1x512xbf16> to vector<1x512xbf16>
    %87 = vector.broadcast %86 : vector<1x512xbf16> to vector<16x512xbf16>
    %88 = arith.mulf %84, %87 : vector<16x512xbf16>
    %89 = vector.extract_strided_slice %11 {offsets = [0, 82], sizes = [16, 512], strides = [1, 1]} : vector<16x658xbf16> to vector<16x512xbf16>
    %90 = vector.extract_strided_slice %7 {offsets = [8, 0, 0], sizes = [1, 1, 512], strides = [1, 1, 1]} : vector<9x1x512xbf16> to vector<1x1x512xbf16>
    %91 = vector.shape_cast %90 : vector<1x1x512xbf16> to vector<1x512xbf16>
    %92 = vector.broadcast %91 : vector<1x512xbf16> to vector<16x512xbf16>
    %93 = arith.mulf %89, %92 : vector<16x512xbf16>
    %94 = vector.extract_strided_slice %11 {offsets = [0, 128], sizes = [16, 512], strides = [1, 1]} : vector<16x658xbf16> to vector<16x512xbf16>
    %95 = vector.extract_strided_slice %7 {offsets = [0, 0, 0], sizes = [1, 1, 512], strides = [1, 1, 1]} : vector<9x1x512xbf16> to vector<1x1x512xbf16>
    %96 = vector.shape_cast %95 : vector<1x1x512xbf16> to vector<1x512xbf16>
    %97 = vector.broadcast %96 : vector<1x512xbf16> to vector<16x512xbf16>
    %98 = arith.mulf %94, %97 : vector<16x512xbf16>
    %99 = vector.extract_strided_slice %11 {offsets = [0, 129], sizes = [16, 512], strides = [1, 1]} : vector<16x658xbf16> to vector<16x512xbf16>
    %100 = vector.extract_strided_slice %7 {offsets = [1, 0, 0], sizes = [1, 1, 512], strides = [1, 1, 1]} : vector<9x1x512xbf16> to vector<1x1x512xbf16>
    %101 = vector.shape_cast %100 : vector<1x1x512xbf16> to vector<1x512xbf16>
    %102 = vector.broadcast %101 : vector<1x512xbf16> to vector<16x512xbf16>
    %103 = arith.mulf %99, %102 : vector<16x512xbf16>
    %104 = vector.extract_strided_slice %11 {offsets = [0, 130], sizes = [16, 512], strides = [1, 1]} : vector<16x658xbf16> to vector<16x512xbf16>
    %105 = vector.extract_strided_slice %7 {offsets = [2, 0, 0], sizes = [1, 1, 512], strides = [1, 1, 1]} : vector<9x1x512xbf16> to vector<1x1x512xbf16>
    %106 = vector.shape_cast %105 : vector<1x1x512xbf16> to vector<1x512xbf16>
    %107 = vector.broadcast %106 : vector<1x512xbf16> to vector<16x512xbf16>
    %108 = arith.mulf %104, %107 : vector<16x512xbf16>
    %109 = vector.extract_strided_slice %11 {offsets = [0, 136], sizes = [16, 512], strides = [1, 1]} : vector<16x658xbf16> to vector<16x512xbf16>
    %110 = vector.extract_strided_slice %7 {offsets = [3, 0, 0], sizes = [1, 1, 512], strides = [1, 1, 1]} : vector<9x1x512xbf16> to vector<1x1x512xbf16>
    %111 = vector.shape_cast %110 : vector<1x1x512xbf16> to vector<1x512xbf16>
    %112 = vector.broadcast %111 : vector<1x512xbf16> to vector<16x512xbf16>
    %113 = arith.mulf %109, %112 : vector<16x512xbf16>
    %114 = vector.extract_strided_slice %11 {offsets = [0, 137], sizes = [16, 512], strides = [1, 1]} : vector<16x658xbf16> to vector<16x512xbf16>
    %115 = vector.extract_strided_slice %11 {offsets = [0, 138], sizes = [16, 512], strides = [1, 1]} : vector<16x658xbf16> to vector<16x512xbf16>
    %116 = vector.extract_strided_slice %7 {offsets = [5, 0, 0], sizes = [1, 1, 512], strides = [1, 1, 1]} : vector<9x1x512xbf16> to vector<1x1x512xbf16>
    %117 = vector.shape_cast %116 : vector<1x1x512xbf16> to vector<1x512xbf16>
    %118 = vector.broadcast %117 : vector<1x512xbf16> to vector<16x512xbf16>
    %119 = arith.mulf %115, %118 : vector<16x512xbf16>
    %120 = vector.extract_strided_slice %11 {offsets = [0, 144], sizes = [16, 512], strides = [1, 1]} : vector<16x658xbf16> to vector<16x512xbf16>
    %121 = vector.extract_strided_slice %7 {offsets = [6, 0, 0], sizes = [1, 1, 512], strides = [1, 1, 1]} : vector<9x1x512xbf16> to vector<1x1x512xbf16>
    %122 = vector.shape_cast %121 : vector<1x1x512xbf16> to vector<1x512xbf16>
    %123 = vector.broadcast %122 : vector<1x512xbf16> to vector<16x512xbf16>
    %124 = arith.mulf %120, %123 : vector<16x512xbf16>
    %125 = vector.extract_strided_slice %11 {offsets = [0, 145], sizes = [16, 512], strides = [1, 1]} : vector<16x658xbf16> to vector<16x512xbf16>
    %126 = vector.extract_strided_slice %7 {offsets = [7, 0, 0], sizes = [1, 1, 512], strides = [1, 1, 1]} : vector<9x1x512xbf16> to vector<1x1x512xbf16>
    %127 = vector.shape_cast %126 : vector<1x1x512xbf16> to vector<1x512xbf16>
    %128 = vector.broadcast %127 : vector<1x512xbf16> to vector<16x512xbf16>
    %129 = arith.mulf %125, %128 : vector<16x512xbf16>
    %130 = vector.extract_strided_slice %11 {offsets = [0, 146], sizes = [16, 512], strides = [1, 1]} : vector<16x658xbf16> to vector<16x512xbf16>
    %131 = vector.extract_strided_slice %7 {offsets = [8, 0, 0], sizes = [1, 1, 512], strides = [1, 1, 1]} : vector<9x1x512xbf16> to vector<1x1x512xbf16>
    %132 = vector.shape_cast %131 : vector<1x1x512xbf16> to vector<1x512xbf16>
    %133 = vector.broadcast %132 : vector<1x512xbf16> to vector<16x512xbf16>
    %134 = arith.mulf %130, %133 : vector<16x512xbf16>
    %135 = tpu.concatenate %16, %21, %26, %31, %32, %37, %42, %47, %52, %57, %62, %67, %72, %73, %78, %83 in 0 : vector<16x512xbf16>, vector<16x512xbf16>, vector<16x512xbf16>, vector<16x512xbf16>, vector<16x512xbf16>, vector<16x512xbf16>, vector<16x512xbf16>, vector<16x512xbf16>, vector<16x512xbf16>, vector<16x512xbf16>, vector<16x512xbf16>, vector<16x512xbf16>, vector<16x512xbf16>, vector<16x512xbf16>, vector<16x512xbf16>, vector<16x512xbf16> -> vector<256x512xbf16>
    %136 = tpu.concatenate %88, %93, %98, %103, %108, %113, %114, %119, %124, %129, %134 in 0 : vector<16x512xbf16>, vector<16x512xbf16>, vector<16x512xbf16>, vector<16x512xbf16>, vector<16x512xbf16>, vector<16x512xbf16>, vector<16x512xbf16>, vector<16x512xbf16>, vector<16x512xbf16>, vector<16x512xbf16>, vector<16x512xbf16> -> vector<176x512xbf16>
    %137 = tpu.concatenate %135, %136 in 0 : vector<256x512xbf16>, vector<176x512xbf16> -> vector<432x512xbf16>
    %cst_18 = arith.constant dense<0.000000e+00> : vector<16x512xf32>
    %138 = tpu.matmul %8, %137, %cst_18 {dimension_numbers = #tpu.dot_dimension_numbers<[1], [0], [0], [1], [0, 0, 1, 1], [], []>} : vector<16x432xbf16>, vector<432x512xbf16>, vector<16x512xf32> -> vector<16x512xf32>
    %139 = vector.broadcast %9 : vector<16x1xf32> to vector<16x512xf32>
    %140 = arith.mulf %138, %139 : vector<16x512xf32>
    %141 = vector.broadcast %10 : vector<16x1xf32> to vector<16x512xf32>
    %142 = arith.addf %140, %141 : vector<16x512xf32>
    %cst_19 = arith.constant 0.000000e+00 : f32
    %143 = vector.broadcast %cst_19 : f32 to vector<16x512xf32>
    %144 = arith.maximumf %142, %143 : vector<16x512xf32>
    %145 = arith.truncf %144 : vector<16x512xf32> to vector<16x512xbf16>
    %c0_20 = arith.constant 0 : index
    %c0_21 = arith.constant 0 : index
    %c0_22 = arith.constant 0 : index
    %146 = vector.load %arg6[%c0_20, %c0_21, %c0_22] : memref<1x16x512xbf16, #tpu.memory_space<vmem>>, vector<1x16x512xbf16>
    %147 = vector.shape_cast %146 : vector<1x16x512xbf16> to vector<16x512xbf16>
    %148 = vector.shape_cast %145 : vector<16x512xbf16> to vector<1x16x512xbf16>
    tpu.vector_store %arg6[%c0_20, %c0_21, %c0_22], %148 {strides = array<i32>} : memref<1x16x512xbf16, #tpu.memory_space<vmem>>, vector<1x16x512xbf16>,
    return
  }
  func.func @transform_0(%arg0: i32) -> (i32, i32, i32) {
    %c0_i32 = arith.constant 0 : i32
    %c0_i32_0 = arith.constant 0 : i32
    %c0_i32_1 = arith.constant 0 : i32
    return %arg0, %c0_i32, %c0_i32_0 : i32, i32, i32
  }
  func.func @transform_1(%arg0: i32) -> (i32, i32, i32) {
    %c0_i32 = arith.constant 0 : i32
    %c0_i32_0 = arith.constant 0 : i32
    %c0_i32_1 = arith.constant 0 : i32
    %c0_i32_2 = arith.constant 0 : i32
    return %c0_i32, %c0_i32_0, %c0_i32_1 : i32, i32, i32
  }
  func.func @transform_2(%arg0: i32) -> (i32, i32) {
    %c0_i32 = arith.constant 0 : i32
    %c0_i32_0 = arith.constant 0 : i32
    %c0_i32_1 = arith.constant 0 : i32
    return %c0_i32, %c0_i32_0 : i32, i32
  }
  func.func @transform_3(%arg0: i32) -> (i32, i32) {
    %c0_i32 = arith.constant 0 : i32
    %c0_i32_0 = arith.constant 0 : i32
    %c0_i32_1 = arith.constant 0 : i32
    return %c0_i32, %c0_i32_0 : i32, i32
  }
  func.func @transform_4(%arg0: i32) -> (i32, i32) {
    %c0_i32 = arith.constant 0 : i32
    %c0_i32_0 = arith.constant 0 : i32
    %c0_i32_1 = arith.constant 0 : i32
    return %c0_i32, %c0_i32_0 : i32, i32
  }
  func.func @transform_5(%arg0: i32) -> (i32, i32, i32) {
    %c0_i32 = arith.constant 0 : i32
    %c0_i32_0 = arith.constant 0 : i32
    %c0_i32_1 = arith.constant 0 : i32
    return %arg0, %c0_i32, %c0_i32_0 : i32, i32, i32
  }
}

</mosaic_0001>

<llo_original>
// kernel: tpu_custom_call.1
$region0: #{tpu_custom_call.1}
  #allocation0 [shape = 'u32[]', space=smem, size = 0x4, offset = 0x4, fixed_abs, tag = 'smem constant byte address 0x4 - core index']
  #allocation1 [shape = 'u32[144,128]{1,0:T(1,128)}', space=vmem, size = 0x12000, scoped, tag = 'internal scratch']
  #allocation2 [shape = 'bf16[16,768]{1,0:T(16,128)(2,1)}', space=vmem, size = 0x6000, scoped, tag = 'scratch operand']
  #allocation3 [shape = 'bf16[16,768]{1,0:T(16,128)(2,1)}', space=vmem, size = 0x6000, scoped, tag = 'scratch operand']
  #allocation4 [shape = 'bf16[16,512]{1,0:T(16,128)(2,1)}', space=vmem, size = 0x4000, scoped, tag = 'scratch operand']
  %s0 = inlined_call_operand.vmem [shape: bf16[2,16,512], index: 0, kind: input, shape index: {}]
  %s1 = inlined_call_operand.vmem [shape: bf16[9,1,512], index: 1, kind: input, shape index: {}]
  %s2 = inlined_call_operand.vmem [shape: bf16[16,432], index: 2, kind: input, shape index: {}]
  %s3 = inlined_call_operand.vmem [shape: f32[16,1], index: 3, kind: input, shape index: {}]
  %s4 = inlined_call_operand.vmem [shape: f32[16,1], index: 4, kind: input, shape index: {}]
  %s5 = inlined_call_operand.hbm [shape: bf16[2,16,512], index: 5, kind: output, shape index: {}]
  %s6 = sld [smem:[#allocation0]]
  $region53: #{tpu_custom_call.1} parent=0
    _
  %s8 = ssub.s32 1, %s6
  %s9 = scalar_select 0, %s8, %s6
  $region1: #{tpu_custom_call.1} parent=0
    #allocation5 [shape = 'u8[32768]{0}', space=vmem, size = 0x8000, scoped, tag = 'output window, operand 0']
    #allocation6 [shape = 's32[2]{0}', space=sflag, size = 0x8, scoped, tag = 'scoped memory for tpu_custom_call.1']
    %10 = vsyncpa [#allocation6], 0
    %s11 = scalar_lea.sflag [#allocation6], 1
    %12 = vsyncpa %s11, 0
    loop: start=0, step=1, limit=4
    $region2: #{tpu_custom_call.1} parent=1 // loop_pre_header
      _
    $region3: #{tpu_custom_call.1} parent=1 // loop_header
      %s14 = sphi 0, %s18
      %p15 = scmp.ge.s32.totalorder %s14, 4
      %s24 = sphi 0, %s26
      %s27 = sphi 0, %s24
      %s28 = sphi 0, %s27
      %s44 = sphi 0, %s28
      %s48 = sphi 0, %s48
      %s50 = sphi 0, %s48
      %s51 = sphi 0, %s50
      %s65 = sphi 0, %s51
      %s69 = sphi 0, %s69
      %s71 = sphi 0, %s69
      %s72 = sphi 0, %s71
      %s86 = sphi 0, %s72
      %s90 = sphi 0, %s90
      %s92 = sphi 0, %s90
      %s93 = sphi 0, %s92
      %s107 = sphi 0, %s93
      %s111 = sphi 0, %s111
      %s113 = sphi 0, %s111
      %s114 = sphi 0, %s113
      %s128 = sphi 0, %s114
      %s134 = sphi 0, %s136
      %s137 = sphi 0, %s134
      %s138 = sphi 0, %s137
      %s154 = sphi 0, %s138
    $region4: #{tpu_custom_call.1} parent=1 // loop_header_branch
      %17 = sbr.rel (%p15) target = $region8
    $region5: #{tpu_custom_call.1} parent=1 // loop_body
      %s19 = ssub.s32 %s14, 1
      %s20 = ssub.s32 %s14, 2
      %s21 = sadd.s32 %s14, 1
      %s22 = ssub.s32 %s14, %s21
      %p23 = scmp.eq.s32.totalorder %s22, 0
      %s25 = sadd.s32 %s24, 1
      %s26 = scalar_select %p23, %s24, %s25
      %p29 = pneg %p23
      %p30 = scmp.eq.s32.totalorder %s14, 1
      %p31 = por %p29, %p30
      %p32 = scmp.ne.s32.totalorder %s24, %s27
      %p33 = scmp.eq.s32.totalorder %s14, 0
      %p34 = por %p32, %p33
      %p35 = scmp.ne.s32.totalorder %s24, %s27
      %p36 = scmp.eq.s32.totalorder %s19, 1
      %p37 = por %p35, %p36
      %p38 = scmp.ne.s32.totalorder %s27, %s28
      %p39 = scmp.eq.s32.totalorder %s19, 0
      %p40 = por %p38, %p39
      %p41 = scmp.ne.s32.totalorder %s27, %s28
      %p42 = scmp.eq.s32.totalorder %s20, 1
      %p43 = por %p41, %p42
      %p45 = scmp.ne.s32.totalorder %s28, %s44
      %p46 = scmp.eq.s32.totalorder %s20, 0
      %p47 = por %p45, %p46
      %s49 = sadd.s32 %s48, 1
      %p52 = scmp.eq.s32.totalorder %s14, 1
      %p53 = scmp.ne.s32.totalorder %s48, %s50
      %p54 = scmp.eq.s32.totalorder %s14, 0
      %p55 = por %p53, %p54
      %p56 = scmp.ne.s32.totalorder %s48, %s50
      %p57 = scmp.eq.s32.totalorder %s19, 1
      %p58 = por %p56, %p57
      %p59 = scmp.ne.s32.totalorder %s50, %s51
      %p60 = scmp.eq.s32.totalorder %s19, 0
      %p61 = por %p59, %p60
      %p62 = scmp.ne.s32.totalorder %s50, %s51
      %p63 = scmp.eq.s32.totalorder %s20, 1
      %p64 = por %p62, %p63
      %p66 = scmp.ne.s32.totalorder %s51, %s65
      %p67 = scmp.eq.s32.totalorder %s20, 0
      %p68 = por %p66, %p67
      %s70 = sadd.s32 %s69, 1
      %p73 = scmp.eq.s32.totalorder %s14, 1
      %p74 = scmp.ne.s32.totalorder %s69, %s71
      %p75 = scmp.eq.s32.totalorder %s14, 0
      %p76 = por %p74, %p75
      %p77 = scmp.ne.s32.totalorder %s69, %s71
      %p78 = scmp.eq.s32.totalorder %s19, 1
      %p79 = por %p77, %p78
      %p80 = scmp.ne.s32.totalorder %s71, %s72
      %p81 = scmp.eq.s32.totalorder %s19, 0
      %p82 = por %p80, %p81
      %p83 = scmp.ne.s32.totalorder %s71, %s72
      %p84 = scmp.eq.s32.totalorder %s20, 1
      %p85 = por %p83, %p84
      %p87 = scmp.ne.s32.totalorder %s72, %s86
      %p88 = scmp.eq.s32.totalorder %s20, 0
      %p89 = por %p87, %p88
      %s91 = sadd.s32 %s90, 1
      %p94 = scmp.eq.s32.totalorder %s14, 1
      %p95 = scmp.ne.s32.totalorder %s90, %s92
      %p96 = scmp.eq.s32.totalorder %s14, 0
      %p97 = por %p95, %p96
      %p98 = scmp.ne.s32.totalorder %s90, %s92
      %p99 = scmp.eq.s32.totalorder %s19, 1
      %p100 = por %p98, %p99
      %p101 = scmp.ne.s32.totalorder %s92, %s93
      %p102 = scmp.eq.s32.totalorder %s19, 0
      %p103 = por %p101, %p102
      %p104 = scmp.ne.s32.totalorder %s92, %s93
      %p105 = scmp.eq.s32.totalorder %s20, 1
      %p106 = por %p104, %p105
      %p108 = scmp.ne.s32.totalorder %s93, %s107
      %p109 = scmp.eq.s32.totalorder %s20, 0
      %p110 = por %p108, %p109
      %s112 = sadd.s32 %s111, 1
      %p115 = scmp.eq.s32.totalorder %s14, 1
      %p116 = scmp.ne.s32.totalorder %s111, %s113
      %p117 = scmp.eq.s32.totalorder %s14, 0
      %p118 = por %p116, %p117
      %p119 = scmp.ne.s32.totalorder %s111, %s113
      %p120 = scmp.eq.s32.totalorder %s19, 1
      %p121 = por %p119, %p120
      %p122 = scmp.ne.s32.totalorder %s113, %s114
      %p123 = scmp.eq.s32.totalorder %s19, 0
      %p124 = por %p122, %p123
      %p125 = scmp.ne.s32.totalorder %s113, %s114
      %p126 = scmp.eq.s32.totalorder %s20, 1
      %p127 = por %p125, %p126
      %p129 = scmp.ne.s32.totalorder %s114, %s128
      %p130 = scmp.eq.s32.totalorder %s20, 0
      %p131 = por %p129, %p130
      %s132 = ssub.s32 %s14, %s21
      %p133 = scmp.eq.s32.totalorder %s132, 0
      %s135 = sadd.s32 %s134, 1
      %s136 = scalar_select %p133, %s134, %s135
      %p139 = pneg %p133
      %p140 = scmp.eq.s32.totalorder %s14, 1
      %p141 = por %p139, %p140
      %p142 = scmp.ne.s32.totalorder %s134, %s137
      %p143 = scmp.eq.s32.totalorder %s14, 0
      %p144 = por %p142, %p143
      %p145 = scmp.ne.s32.totalorder %s134, %s137
      %p146 = scmp.eq.s32.totalorder %s19, 1
      %p147 = por %p145, %p146
      %p148 = scmp.ne.s32.totalorder %s137, %s138
      %p149 = scmp.eq.s32.totalorder %s19, 0
      %p150 = por %p148, %p149
      %p151 = scmp.ne.s32.totalorder %s137, %s138
      %p152 = scmp.eq.s32.totalorder %s20, 1
      %p153 = por %p151, %p152
      %p155 = scmp.ne.s32.totalorder %s138, %s154
      %p156 = scmp.eq.s32.totalorder %s20, 0
      %p157 = por %p155, %p156
      %p158 = scmp.le.s32.totalorder 1, %s14
      %p159 = scmp.lt.s32.totalorder %s14, 3
      %p160 = pnand %p158, %p159
      %p161 = pneg %p160
      // Predicated region
      $region9: #{tpu_custom_call.1} parent=5 // pred_check
        _
      $region10: #{tpu_custom_call.1} parent=5 // pred_check_branch
        %163 = sbr.rel (%p160) target = $region12
      $region11: #{tpu_custom_call.1} parent=5 // pred_region
        %s164 = ssub.s32 %s14, 1
        // Predicated region
        $region13: #{tpu_custom_call.1} parent=11 // pred_check
          %p165 = pneg %p61
        $region14: #{tpu_custom_call.1} parent=11 // pred_check_branch
          %167 = sbr.rel (%p165) target = $region16
        $region15: #{tpu_custom_call.1} parent=11 // pred_region
          _
        $region16: #{tpu_custom_call.1} parent=11 // pred_fallthru
          _
        // Predicated region
        $region17: #{tpu_custom_call.1} parent=11 // pred_check
          %p168 = pneg %p82
        $region18: #{tpu_custom_call.1} parent=11 // pred_check_branch
          %170 = sbr.rel (%p168) target = $region20
        $region19: #{tpu_custom_call.1} parent=11 // pred_region
          _
        $region20: #{tpu_custom_call.1} parent=11 // pred_fallthru
          _
        // Predicated region
        $region21: #{tpu_custom_call.1} parent=11 // pred_check
          %p171 = pneg %p103
        $region22: #{tpu_custom_call.1} parent=11 // pred_check_branch
          %173 = sbr.rel (%p171) target = $region24
        $region23: #{tpu_custom_call.1} parent=11 // pred_region
          _
        $region24: #{tpu_custom_call.1} parent=11 // pred_fallthru
          _
        // Predicated region
        $region25: #{tpu_custom_call.1} parent=11 // pred_check
          %p174 = pneg %p124
        $region26: #{tpu_custom_call.1} parent=11 // pred_check_branch
          %176 = sbr.rel (%p174) target = $region28
        $region27: #{tpu_custom_call.1} parent=11 // pred_region
          _
        $region28: #{tpu_custom_call.1} parent=11 // pred_fallthru
          _
      $region12: #{tpu_custom_call.1} parent=5 // pred_fallthru
        _
      %p177 = scmp.lt.s32.totalorder %s14, 2
      // Predicated region
      $region29: #{tpu_custom_call.1} parent=5 // pred_check
        %p178 = pneg %p177
      $region30: #{tpu_custom_call.1} parent=5 // pred_check_branch
        %180 = sbr.rel (%p178) target = $region32
      $region31: #{tpu_custom_call.1} parent=5 // pred_region
        // Predicated region
        $region33: #{tpu_custom_call.1} parent=31 // pred_check
          %p181 = pneg %p34
        $region34: #{tpu_custom_call.1} parent=31 // pred_check_branch
          %183 = sbr.rel (%p181) target = $region36
        $region35: #{tpu_custom_call.1} parent=31 // pred_region
          %p184 = scmp.lt.s32.totalorder %s14, 1
          %s185 = scalar_select %p184, %s14, 1
          %s186 = smul.addr %s185, 8
          %s187 = smul.addr %s186, 4
          %s188 = scalar_lea.vmem %s0, %s187
        $region36: #{tpu_custom_call.1} parent=31 // pred_fallthru
          _
      $region32: #{tpu_custom_call.1} parent=5 // pred_fallthru
        _
      %p189 = scmp.le.s32.totalorder 1, %s14
      %p190 = scmp.lt.s32.totalorder %s14, 3
      %p191 = pnand %p189, %p190
      %p192 = pneg %p191
      // Predicated region
      $region37: #{tpu_custom_call.1} parent=5 // pred_check
        _
      $region38: #{tpu_custom_call.1} parent=5 // pred_check_branch
        %194 = sbr.rel (%p191) target = $region40
      $region39: #{tpu_custom_call.1} parent=5 // pred_region
        %s195 = ssub.s32 %s14, 1
        %p196 = scmp.lt.s32.totalorder %s19, 1
        %s197 = scalar_select %p196, %s19, 1
        %s198 = smul.addr %s197, 8
        %s199 = smul.addr %s198, 4
        %s200 = scalar_lea.vmem %s0, %s199
        %p201 = pneg %p40
        %p202 = pneg %p37
        %p203 = pneg %p61
        %p204 = pneg %p58
        %p205 = pneg %p82
        %p206 = pneg %p79
        %p207 = pneg %p103
        %p208 = pneg %p100
        %p209 = pneg %p124
        %p210 = pneg %p121
        %p211 = pneg %p150
        %p212 = pneg %p147
        %s213 = sand.u32 %s137, 1
        %s214 = scalar_lea.sflag [#allocation6], %s213
        %s215 = sand.u32 %s137, 1
        %s216 = smul.addr %s215, 32
        %s217 = scalar_lea.vmem [#allocation5], %s216
        %p218 = scmp.lt.s32.totalorder %s19, 1
        %s219 = scalar_select %p218, %s19, 1
        %s220 = smul.addr %s219, 8
        %s221 = smul.addr %s220, 4
        %s222 = scalar_lea.vmem %s0, %s221
        %224 = vst [vmem:[#allocation2] sm:$0xff] 0
        %225 = vst [vmem:[#allocation2 + $0x8] sm:$0xff] 0
        %226 = vst [vmem:[#allocation2 + $0x10] sm:$0xff] 0
        %227 = vst [vmem:[#allocation2 + $0x18] sm:$0xff] 0
        %228 = vst [vmem:[#allocation2 + $0x20] sm:$0xff] 0
        %229 = vst [vmem:[#allocation2 + $0x28] sm:$0xff] 0
        %230 = vst [vmem:[#allocation3] sm:$0xff] 0
        %231 = vst [vmem:[#allocation3 + $0x8] sm:$0xff] 0
        %232 = vst [vmem:[#allocation3 + $0x10] sm:$0xff] 0
        %233 = vst [vmem:[#allocation3 + $0x18] sm:$0xff] 0
        %234 = vst [vmem:[#allocation3 + $0x20] sm:$0xff] 0
        %235 = vst [vmem:[#allocation3 + $0x28] sm:$0xff] 0
        %v236 = vld [vmem:[%s222] sm:$0xff]
        %v237 = vld [vmem:[%s222 + $0x8] sm:$0xff]
        %v238 = vld [vmem:[%s222 + $0x10] sm:$0xff]
        %v239 = vld [vmem:[%s222 + $0x18] sm:$0xff]
        %v244 = vunpack.c.l.b16 %v236
        %v245 = vunpack.c.h.b16 %v236
        %v246 = vunpack.c.l.b16 %v237
        %v247 = vunpack.c.h.b16 %v237
        %v248 = vunpack.c.l.b16 %v238
        %v249 = vunpack.c.h.b16 %v238
        %v250 = vunpack.c.l.b16 %v239
        %v251 = vunpack.c.h.b16 %v239
        %v252 = vpack.c.b16 %v248, %v244
        %v253 = vpack.c.b16 %v249, %v245
        %v254 = vpack.c.b16 %v250, %v246
        %v255 = vpack.c.b16 %v251, %v247
        %260 = vst [vmem:[#allocation2 + $0x8] sm:$0xff] %v252
        %261 = vst [vmem:[#allocation2 + $0x10] sm:$0xff] %v253
        %262 = vst [vmem:[#allocation2 + $0x18] sm:$0xff] %v254
        %263 = vst [vmem:[#allocation2 + $0x20] sm:$0xff] %v255
        %v264 = vld [vmem:[%s1] sm:$0xf]
        %v265 = vld [vmem:[%s1 + $0x4] sm:$0xf]
        %v266 = vld [vmem:[%s1 + $0x8] sm:$0xf]
        %v267 = vld [vmem:[%s1 + $0xc] sm:$0xf]
        %v268 = vld [vmem:[%s1 + $0x14] sm:$0xf]
        %v269 = vld [vmem:[%s1 + $0x18] sm:$0xf]
        %v270 = vld [vmem:[%s1 + $0x1c] sm:$0xf]
        %v271 = vld [vmem:[%s1 + $0x20] sm:$0xf]
        %v272 = vld [vmem:[%s2] sm:$0xff]
        %v273 = vld [vmem:[%s2 + $0x8] sm:$0xff]
        %v274 = vld [vmem:[%s2 + $0x10] sm:$0xff]
        %v275 = vld [vmem:[%s2 + $0x18] sm:$0xff]
        %v276 = vld [vmem:[%s3] sm:$0xff]
        %v277 = vld [vmem:[%s3 + $0x8] sm:$0xff]
        %v278 = vld [vmem:[%s4] sm:$0xff]
        %v279 = vld [vmem:[%s4 + $0x8] sm:$0xff]
        %v280 = vld [vmem:[#allocation2] sm:$0xff]
        %v281 = vld [vmem:[#allocation2 + $0x8] sm:$0xff]
        %v282 = vld [vmem:[#allocation2 + $0x10] sm:$0xff]
        %v283 = vld [vmem:[#allocation2 + $0x18] sm:$0xff]
        %v284 = vld [vmem:[#allocation2 + $0x20] sm:$0xff]
        %v285 = vld [vmem:[#allocation2 + $0x28] sm:$0xff]
        %v288 = vunpack.c.l.s4 1966171168
        %v289 = vunpack.c.0.s8 %v288
        %v290 = vlaneseq
        %v291 = vshrl.u32 %v290, 7
        %v292 = vsub.s32 %v289, %v291
        %v293 = vrot.slane %v264, %v292
        %v294 = vcombine.high %v293, %v293
        %v296 = vunpack.c.l.s4 1966171168
        %v297 = vunpack.c.0.s8 %v296
        %v298 = vlaneseq
        %v299 = vshrl.u32 %v298, 7
        %v300 = vsub.s32 %v297, %v299
        %v301 = vrot.slane %v293, %v300
        %v303 = vunpack.c.l.s4 1966171168
        %v304 = vunpack.c.0.s8 %v303
        %v305 = vlaneseq
        %v306 = vshrl.u32 %v305, 7
        %v307 = vsub.s32 %v304, %v306
        %v308 = vrot.slane %v294, %v307
        %v309 = vcombine.high %v301, %v301
        %v310 = vcombine.high %v308, %v308
        %v312 = vpack.i.b16 %v301, %v301
        %v314 = vlaneseq
        %v315 = vshrl.u32 %v314, 7
        %v316 = vsub.s32 0, %v315
        %v317 = vrot.slane %v312, %v316
        %v319 = vpack.i.b16 %v308, %v308
        %v321 = vlaneseq
        %v322 = vshrl.u32 %v321, 7
        %v323 = vsub.s32 0, %v322
        %v324 = vrot.slane %v319, %v323
        %v326 = vpack.i.b16 %v309, %v309
        %v328 = vlaneseq
        %v329 = vshrl.u32 %v328, 7
        %v330 = vsub.s32 0, %v329
        %v331 = vrot.slane %v326, %v330
        %v333 = vpack.i.b16 %v310, %v310
        %v335 = vlaneseq
        %v336 = vshrl.u32 %v335, 7
        %v337 = vsub.s32 0, %v336
        %v338 = vrot.slane %v333, %v337
        %343 = vrot.lane.b32.xlu0 %v317, 55
        %v344 = vpop.permute.xlu0 %343
        %345 = vrot.lane.b32.xlu0 %v324, 55
        %v346 = vpop.permute.xlu0 %345
        %347 = vrot.lane.b32.xlu0 %v331, 55
        %v348 = vpop.permute.xlu0 %347
        %349 = vrot.lane.b32.xlu0 %v338, 55
        %v350 = vpop.permute.xlu0 %349
        %vm351 = vcmask 449536
        %v352 = vsel %vm351, %v344, %v346
        %v353 = vsel %vm351, %v346, %v348
        %v354 = vsel %vm351, %v348, %v350
        %v360 = vmul.bf16 %v280, %v344
        %v361 = vmul.bf16 %v281, %v352
        %v362 = vmul.bf16 %v282, %v353
        %v363 = vmul.bf16 %v283, %v354
        %v364 = vmul.bf16 %v284, %v350
        %v367 = vunpack.c.l.s4 1966171168
        %v368 = vunpack.c.0.s8 %v367
        %v369 = vlaneseq
        %v370 = vshrl.u32 %v369, 7
        %v371 = vsub.s32 %v368, %v370
        %v372 = vrot.slane %v265, %v371
        %v373 = vcombine.high %v372, %v372
        %v375 = vunpack.c.l.s4 1966171168
        %v376 = vunpack.c.0.s8 %v375
        %v377 = vlaneseq
        %v378 = vshrl.u32 %v377, 7
        %v379 = vsub.s32 %v376, %v378
        %v380 = vrot.slane %v372, %v379
        %v382 = vunpack.c.l.s4 1966171168
        %v383 = vunpack.c.0.s8 %v382
        %v384 = vlaneseq
        %v385 = vshrl.u32 %v384, 7
        %v386 = vsub.s32 %v383, %v385
        %v387 = vrot.slane %v373, %v386
        %v388 = vcombine.high %v380, %v380
        %v389 = vcombine.high %v387, %v387
        %v391 = vpack.i.b16 %v380, %v380
        %v393 = vlaneseq
        %v394 = vshrl.u32 %v393, 7
        %v395 = vsub.s32 0, %v394
        %v396 = vrot.slane %v391, %v395
        %v398 = vpack.i.b16 %v387, %v387
        %v400 = vlaneseq
        %v401 = vshrl.u32 %v400, 7
        %v402 = vsub.s32 0, %v401
        %v403 = vrot.slane %v398, %v402
        %v405 = vpack.i.b16 %v388, %v388
        %v407 = vlaneseq
        %v408 = vshrl.u32 %v407, 7
        %v409 = vsub.s32 0, %v408
        %v410 = vrot.slane %v405, %v409
        %v412 = vpack.i.b16 %v389, %v389
        %v414 = vlaneseq
        %v415 = vshrl.u32 %v414, 7
        %v416 = vsub.s32 0, %v415
        %v417 = vrot.slane %v412, %v416
        %422 = vrot.lane.b32.xlu0 %v396, 56
        %v423 = vpop.permute.xlu0 %422
        %424 = vrot.lane.b32.xlu0 %v403, 56
        %v425 = vpop.permute.xlu0 %424
        %426 = vrot.lane.b32.xlu0 %v410, 56
        %v427 = vpop.permute.xlu0 %426
        %428 = vrot.lane.b32.xlu0 %v417, 56
        %v429 = vpop.permute.xlu0 %428
        %vm430 = vcmask 457728
        %v431 = vsel %vm430, %v423, %v425
        %v432 = vsel %vm430, %v425, %v427
        %v433 = vsel %vm430, %v427, %v429
        %v439 = vmul.bf16 %v280, %v423
        %v440 = vmul.bf16 %v281, %v431
        %v441 = vmul.bf16 %v282, %v432
        %v442 = vmul.bf16 %v283, %v433
        %v443 = vmul.bf16 %v284, %v429
        %v446 = vunpack.c.l.s4 1966171168
        %v447 = vunpack.c.0.s8 %v446
        %v448 = vlaneseq
        %v449 = vshrl.u32 %v448, 7
        %v450 = vsub.s32 %v447, %v449
        %v451 = vrot.slane %v266, %v450
        %v452 = vcombine.high %v451, %v451
        %v454 = vunpack.c.l.s4 1966171168
        %v455 = vunpack.c.0.s8 %v454
        %v456 = vlaneseq
        %v457 = vshrl.u32 %v456, 7
        %v458 = vsub.s32 %v455, %v457
        %v459 = vrot.slane %v451, %v458
        %v461 = vunpack.c.l.s4 1966171168
        %v462 = vunpack.c.0.s8 %v461
        %v463 = vlaneseq
        %v464 = vshrl.u32 %v463, 7
        %v465 = vsub.s32 %v462, %v464
        %v466 = vrot.slane %v452, %v465
        %v467 = vcombine.high %v459, %v459
        %v468 = vcombine.high %v466, %v466
        %v470 = vpack.i.b16 %v459, %v459
        %v472 = vlaneseq
        %v473 = vshrl.u32 %v472, 7
        %v474 = vsub.s32 0, %v473
        %v475 = vrot.slane %v470, %v474
        %v477 = vpack.i.b16 %v466, %v466
        %v479 = vlaneseq
        %v480 = vshrl.u32 %v479, 7
        %v481 = vsub.s32 0, %v480
        %v482 = vrot.slane %v477, %v481
        %v484 = vpack.i.b16 %v467, %v467
        %v486 = vlaneseq
        %v487 = vshrl.u32 %v486, 7
        %v488 = vsub.s32 0, %v487
        %v489 = vrot.slane %v484, %v488
        %v491 = vpack.i.b16 %v468, %v468
        %v493 = vlaneseq
        %v494 = vshrl.u32 %v493, 7
        %v495 = vsub.s32 0, %v494
        %v496 = vrot.slane %v491, %v495
        %501 = vrot.lane.b32.xlu0 %v475, 57
        %v502 = vpop.permute.xlu0 %501
        %503 = vrot.lane.b32.xlu0 %v482, 57
        %v504 = vpop.permute.xlu0 %503
        %505 = vrot.lane.b32.xlu0 %v489, 57
        %v506 = vpop.permute.xlu0 %505
        %507 = vrot.lane.b32.xlu0 %v496, 57
        %v508 = vpop.permute.xlu0 %507
        %vm509 = vcmask 465920
        %v510 = vsel %vm509, %v502, %v504
        %v511 = vsel %vm509, %v504, %v506
        %v512 = vsel %vm509, %v506, %v508
        %v518 = vmul.bf16 %v280, %v502
        %v519 = vmul.bf16 %v281, %v510
        %v520 = vmul.bf16 %v282, %v511
        %v521 = vmul.bf16 %v283, %v512
        %v522 = vmul.bf16 %v284, %v508
        %v525 = vunpack.c.l.s4 1966171168
        %v526 = vunpack.c.0.s8 %v525
        %v527 = vlaneseq
        %v528 = vshrl.u32 %v527, 7
        %v529 = vsub.s32 %v526, %v528
        %v530 = vrot.slane %v267, %v529
        %v531 = vcombine.high %v530, %v530
        %v533 = vunpack.c.l.s4 1966171168
        %v534 = vunpack.c.0.s8 %v533
        %v535 = vlaneseq
        %v536 = vshrl.u32 %v535, 7
        %v537 = vsub.s32 %v534, %v536
        %v538 = vrot.slane %v530, %v537
        %v540 = vunpack.c.l.s4 1966171168
        %v541 = vunpack.c.0.s8 %v540
        %v542 = vlaneseq
        %v543 = vshrl.u32 %v542, 7
        %v544 = vsub.s32 %v541, %v543
        %v545 = vrot.slane %v531, %v544
        %v546 = vcombine.high %v538, %v538
        %v547 = vcombine.high %v545, %v545
        %v549 = vpack.i.b16 %v538, %v538
        %v551 = vlaneseq
        %v552 = vshrl.u32 %v551, 7
        %v553 = vsub.s32 0, %v552
        %v554 = vrot.slane %v549, %v553
        %v556 = vpack.i.b16 %v545, %v545
        %v558 = vlaneseq
        %v559 = vshrl.u32 %v558, 7
        %v560 = vsub.s32 0, %v559
        %v561 = vrot.slane %v556, %v560
        %v563 = vpack.i.b16 %v546, %v546
        %v565 = vlaneseq
        %v566 = vshrl.u32 %v565, 7
        %v567 = vsub.s32 0, %v566
        %v568 = vrot.slane %v563, %v567
        %v570 = vpack.i.b16 %v547, %v547
        %v572 = vlaneseq
        %v573 = vshrl.u32 %v572, 7
        %v574 = vsub.s32 0, %v573
        %v575 = vrot.slane %v570, %v574
        %580 = vrot.lane.b32.xlu0 %v554, 63
        %v581 = vpop.permute.xlu0 %580
        %582 = vrot.lane.b32.xlu0 %v561, 63
        %v583 = vpop.permute.xlu0 %582
        %584 = vrot.lane.b32.xlu0 %v568, 63
        %v585 = vpop.permute.xlu0 %584
        %586 = vrot.lane.b32.xlu0 %v575, 63
        %v587 = vpop.permute.xlu0 %586
        %vm588 = vcmask 515072
        %v589 = vsel %vm588, %v581, %v583
        %v590 = vsel %vm588, %v583, %v585
        %v591 = vsel %vm588, %v585, %v587
        %v597 = vmul.bf16 %v280, %v581
        %v598 = vmul.bf16 %v281, %v589
        %v599 = vmul.bf16 %v282, %v590
        %v600 = vmul.bf16 %v283, %v591
        %v601 = vmul.bf16 %v284, %v587
        %v604 = vunpack.c.l.s4 1966171168
        %v605 = vunpack.c.0.s8 %v604
        %v606 = vlaneseq
        %v607 = vshrl.u32 %v606, 7
        %v608 = vsub.s32 %v605, %v607
        %v609 = vrot.slane %v268, %v608
        %v610 = vcombine.high %v609, %v609
        %v612 = vunpack.c.l.s4 1966171168
        %v613 = vunpack.c.0.s8 %v612
        %v614 = vlaneseq
        %v615 = vshrl.u32 %v614, 7
        %v616 = vsub.s32 %v613, %v615
        %v617 = vrot.slane %v609, %v616
        %v619 = vunpack.c.l.s4 1966171168
        %v620 = vunpack.c.0.s8 %v619
        %v621 = vlaneseq
        %v622 = vshrl.u32 %v621, 7
        %v623 = vsub.s32 %v620, %v622
        %v624 = vrot.slane %v610, %v623
        %v625 = vcombine.high %v617, %v617
        %v626 = vcombine.high %v624, %v624
        %v628 = vpack.i.b16 %v617, %v617
        %v630 = vlaneseq
        %v631 = vshrl.u32 %v630, 7
        %v632 = vsub.s32 0, %v631
        %v633 = vrot.slane %v628, %v632
        %v635 = vpack.i.b16 %v624, %v624
        %v637 = vlaneseq
        %v638 = vshrl.u32 %v637, 7
        %v639 = vsub.s32 0, %v638
        %v640 = vrot.slane %v635, %v639
        %v642 = vpack.i.b16 %v625, %v625
        %v644 = vlaneseq
        %v645 = vshrl.u32 %v644, 7
        %v646 = vsub.s32 0, %v645
        %v647 = vrot.slane %v642, %v646
        %v649 = vpack.i.b16 %v626, %v626
        %v651 = vlaneseq
        %v652 = vshrl.u32 %v651, 7
        %v653 = vsub.s32 0, %v652
        %v654 = vrot.slane %v649, %v653
        %659 = vrot.lane.b32.xlu0 %v633, 65
        %v660 = vpop.permute.xlu0 %659
        %661 = vrot.lane.b32.xlu0 %v640, 65
        %v662 = vpop.permute.xlu0 %661
        %663 = vrot.lane.b32.xlu0 %v647, 65
        %v664 = vpop.permute.xlu0 %663
        %665 = vrot.lane.b32.xlu0 %v654, 65
        %v666 = vpop.permute.xlu0 %665
        %vm667 = vcmask 531456
        %v668 = vsel %vm667, %v660, %v662
        %v669 = vsel %vm667, %v662, %v664
        %v670 = vsel %vm667, %v664, %v666
        %v676 = vmul.bf16 %v280, %v660
        %v677 = vmul.bf16 %v281, %v668
        %v678 = vmul.bf16 %v282, %v669
        %v679 = vmul.bf16 %v283, %v670
        %v680 = vmul.bf16 %v284, %v666
        %v683 = vunpack.c.l.s4 1966171168
        %v684 = vunpack.c.0.s8 %v683
        %v685 = vlaneseq
        %v686 = vshrl.u32 %v685, 7
        %v687 = vsub.s32 %v684, %v686
        %v688 = vrot.slane %v269, %v687
        %v689 = vcombine.high %v688, %v688
        %v691 = vunpack.c.l.s4 1966171168
        %v692 = vunpack.c.0.s8 %v691
        %v693 = vlaneseq
        %v694 = vshrl.u32 %v693, 7
        %v695 = vsub.s32 %v692, %v694
        %v696 = vrot.slane %v688, %v695
        %v698 = vunpack.c.l.s4 1966171168
        %v699 = vunpack.c.0.s8 %v698
        %v700 = vlaneseq
        %v701 = vshrl.u32 %v700, 7
        %v702 = vsub.s32 %v699, %v701
        %v703 = vrot.slane %v689, %v702
        %v704 = vcombine.high %v696, %v696
        %v705 = vcombine.high %v703, %v703
        %v707 = vpack.i.b16 %v696, %v696
        %v709 = vlaneseq
        %v710 = vshrl.u32 %v709, 7
        %v711 = vsub.s32 0, %v710
        %v712 = vrot.slane %v707, %v711
        %v714 = vpack.i.b16 %v703, %v703
        %v716 = vlaneseq
        %v717 = vshrl.u32 %v716, 7
        %v718 = vsub.s32 0, %v717
        %v719 = vrot.slane %v714, %v718
        %v721 = vpack.i.b16 %v704, %v704
        %v723 = vlaneseq
        %v724 = vshrl.u32 %v723, 7
        %v725 = vsub.s32 0, %v724
        %v726 = vrot.slane %v721, %v725
        %v728 = vpack.i.b16 %v705, %v705
        %v730 = vlaneseq
        %v731 = vshrl.u32 %v730, 7
        %v732 = vsub.s32 0, %v731
        %v733 = vrot.slane %v728, %v732
        %738 = vrot.lane.b32.xlu0 %v712, 71
        %v739 = vpop.permute.xlu0 %738
        %740 = vrot.lane.b32.xlu0 %v719, 71
        %v741 = vpop.permute.xlu0 %740
        %742 = vrot.lane.b32.xlu0 %v726, 71
        %v743 = vpop.permute.xlu0 %742
        %744 = vrot.lane.b32.xlu0 %v733, 71
        %v745 = vpop.permute.xlu0 %744
        %vm746 = vcmask 580608
        %v747 = vsel %vm746, %v739, %v741
        %v748 = vsel %vm746, %v741, %v743
        %v749 = vsel %vm746, %v743, %v745
        %v755 = vmul.bf16 %v280, %v739
        %v756 = vmul.bf16 %v281, %v747
        %v757 = vmul.bf16 %v282, %v748
        %v758 = vmul.bf16 %v283, %v749
        %v759 = vmul.bf16 %v284, %v745
        %v762 = vunpack.c.l.s4 1966171168
        %v763 = vunpack.c.0.s8 %v762
        %v764 = vlaneseq
        %v765 = vshrl.u32 %v764, 7
        %v766 = vsub.s32 %v763, %v765
        %v767 = vrot.slane %v270, %v766
        %v768 = vcombine.high %v767, %v767
        %v770 = vunpack.c.l.s4 1966171168
        %v771 = vunpack.c.0.s8 %v770
        %v772 = vlaneseq
        %v773 = vshrl.u32 %v772, 7
        %v774 = vsub.s32 %v771, %v773
        %v775 = vrot.slane %v767, %v774
        %v777 = vunpack.c.l.s4 1966171168
        %v778 = vunpack.c.0.s8 %v777
        %v779 = vlaneseq
        %v780 = vshrl.u32 %v779, 7
        %v781 = vsub.s32 %v778, %v780
        %v782 = vrot.slane %v768, %v781
        %v783 = vcombine.high %v775, %v775
        %v784 = vcombine.high %v782, %v782
        %v786 = vpack.i.b16 %v775, %v775
        %v788 = vlaneseq
        %v789 = vshrl.u32 %v788, 7
        %v790 = vsub.s32 0, %v789
        %v791 = vrot.slane %v786, %v790
        %v793 = vpack.i.b16 %v782, %v782
        %v795 = vlaneseq
        %v796 = vshrl.u32 %v795, 7
        %v797 = vsub.s32 0, %v796
        %v798 = vrot.slane %v793, %v797
        %v800 = vpack.i.b16 %v783, %v783
        %v802 = vlaneseq
        %v803 = vshrl.u32 %v802, 7
        %v804 = vsub.s32 0, %v803
        %v805 = vrot.slane %v800, %v804
        %v807 = vpack.i.b16 %v784, %v784
        %v809 = vlaneseq
        %v810 = vshrl.u32 %v809, 7
        %v811 = vsub.s32 0, %v810
        %v812 = vrot.slane %v807, %v811
        %817 = vrot.lane.b32.xlu0 %v791, 72
        %v818 = vpop.permute.xlu0 %817
        %819 = vrot.lane.b32.xlu0 %v798, 72
        %v820 = vpop.permute.xlu0 %819
        %821 = vrot.lane.b32.xlu0 %v805, 72
        %v822 = vpop.permute.xlu0 %821
        %823 = vrot.lane.b32.xlu0 %v812, 72
        %v824 = vpop.permute.xlu0 %823
        %vm825 = vcmask 588800
        %v826 = vsel %vm825, %v818, %v820
        %v827 = vsel %vm825, %v820, %v822
        %v828 = vsel %vm825, %v822, %v824
        %v834 = vmul.bf16 %v280, %v818
        %v835 = vmul.bf16 %v281, %v826
        %v836 = vmul.bf16 %v282, %v827
        %v837 = vmul.bf16 %v283, %v828
        %v838 = vmul.bf16 %v284, %v824
        %v841 = vunpack.c.l.s4 1966171168
        %v842 = vunpack.c.0.s8 %v841
        %v843 = vlaneseq
        %v844 = vshrl.u32 %v843, 7
        %v845 = vsub.s32 %v842, %v844
        %v846 = vrot.slane %v271, %v845
        %v847 = vcombine.high %v846, %v846
        %v849 = vunpack.c.l.s4 1966171168
        %v850 = vunpack.c.0.s8 %v849
        %v851 = vlaneseq
        %v852 = vshrl.u32 %v851, 7
        %v853 = vsub.s32 %v850, %v852
        %v854 = vrot.slane %v846, %v853
        %v856 = vunpack.c.l.s4 1966171168
        %v857 = vunpack.c.0.s8 %v856
        %v858 = vlaneseq
        %v859 = vshrl.u32 %v858, 7
        %v860 = vsub.s32 %v857, %v859
        %v861 = vrot.slane %v847, %v860
        %v862 = vcombine.high %v854, %v854
        %v863 = vcombine.high %v861, %v861
        %v865 = vpack.i.b16 %v854, %v854
        %v867 = vlaneseq
        %v868 = vshrl.u32 %v867, 7
        %v869 = vsub.s32 0, %v868
        %v870 = vrot.slane %v865, %v869
        %v872 = vpack.i.b16 %v861, %v861
        %v874 = vlaneseq
        %v875 = vshrl.u32 %v874, 7
        %v876 = vsub.s32 0, %v875
        %v877 = vrot.slane %v872, %v876
        %v879 = vpack.i.b16 %v862, %v862
        %v881 = vlaneseq
        %v882 = vshrl.u32 %v881, 7
        %v883 = vsub.s32 0, %v882
        %v884 = vrot.slane %v879, %v883
        %v886 = vpack.i.b16 %v863, %v863
        %v888 = vlaneseq
        %v889 = vshrl.u32 %v888, 7
        %v890 = vsub.s32 0, %v889
        %v891 = vrot.slane %v886, %v890
        %896 = vrot.lane.b32.xlu0 %v870, 73
        %v897 = vpop.permute.xlu0 %896
        %898 = vrot.lane.b32.xlu0 %v877, 73
        %v899 = vpop.permute.xlu0 %898
        %900 = vrot.lane.b32.xlu0 %v884, 73
        %v901 = vpop.permute.xlu0 %900
        %902 = vrot.lane.b32.xlu0 %v891, 73
        %v903 = vpop.permute.xlu0 %902
        %vm904 = vcmask 596992
        %v905 = vsel %vm904, %v897, %v899
        %v906 = vsel %vm904, %v899, %v901
        %v907 = vsel %vm904, %v901, %v903
        %v913 = vmul.bf16 %v280, %v897
        %v914 = vmul.bf16 %v281, %v905
        %v915 = vmul.bf16 %v282, %v906
        %v916 = vmul.bf16 %v283, %v907
        %v917 = vmul.bf16 %v284, %v903
        %918 = vrot.lane.b32.xlu0 %v317, 119
        %v919 = vpop.permute.xlu0 %918
        %920 = vrot.lane.b32.xlu0 %v324, 119
        %v921 = vpop.permute.xlu0 %920
        %922 = vrot.lane.b32.xlu0 %v331, 119
        %v923 = vpop.permute.xlu0 %922
        %924 = vrot.lane.b32.xlu0 %v338, 119
        %v925 = vpop.permute.xlu0 %924
        %vm926 = vcmask 973824
        %v927 = vsel %vm926, %v919, %v921
        %v928 = vsel %vm926, %v921, %v923
        %v929 = vsel %vm926, %v923, %v925
        %v935 = vmul.bf16 %v280, %v919
        %v936 = vmul.bf16 %v281, %v927
        %v937 = vmul.bf16 %v282, %v928
        %v938 = vmul.bf16 %v283, %v929
        %v939 = vmul.bf16 %v284, %v925
        %940 = vrot.lane.b32.xlu0 %v396, 120
        %v941 = vpop.permute.xlu0 %940
        %942 = vrot.lane.b32.xlu0 %v403, 120
        %v943 = vpop.permute.xlu0 %942
        %944 = vrot.lane.b32.xlu0 %v410, 120
        %v945 = vpop.permute.xlu0 %944
        %946 = vrot.lane.b32.xlu0 %v417, 120
        %v947 = vpop.permute.xlu0 %946
        %vm948 = vcmask 982016
        %v949 = vsel %vm948, %v941, %v943
        %v950 = vsel %vm948, %v943, %v945
        %v951 = vsel %vm948, %v945, %v947
        %v957 = vmul.bf16 %v280, %v941
        %v958 = vmul.bf16 %v281, %v949
        %v959 = vmul.bf16 %v282, %v950
        %v960 = vmul.bf16 %v283, %v951
        %v961 = vmul.bf16 %v284, %v947
        %962 = vrot.lane.b32.xlu0 %v475, 121
        %v963 = vpop.permute.xlu0 %962
        %964 = vrot.lane.b32.xlu0 %v482, 121
        %v965 = vpop.permute.xlu0 %964
        %966 = vrot.lane.b32.xlu0 %v489, 121
        %v967 = vpop.permute.xlu0 %966
        %968 = vrot.lane.b32.xlu0 %v496, 121
        %v969 = vpop.permute.xlu0 %968
        %vm970 = vcmask 990208
        %v971 = vsel %vm970, %v963, %v965
        %v972 = vsel %vm970, %v965, %v967
        %v973 = vsel %vm970, %v967, %v969
        %v979 = vmul.bf16 %v280, %v963
        %v980 = vmul.bf16 %v281, %v971
        %v981 = vmul.bf16 %v282, %v972
        %v982 = vmul.bf16 %v283, %v973
        %v983 = vmul.bf16 %v284, %v969
        %984 = vrot.lane.b32.xlu0 %v554, 127
        %v985 = vpop.permute.xlu0 %984
        %986 = vrot.lane.b32.xlu0 %v561, 127
        %v987 = vpop.permute.xlu0 %986
        %988 = vrot.lane.b32.xlu0 %v568, 127
        %v989 = vpop.permute.xlu0 %988
        %990 = vrot.lane.b32.xlu0 %v575, 127
        %v991 = vpop.permute.xlu0 %990
        %vm992 = vcmask 1039360
        %v993 = vsel %vm992, %v985, %v987
        %v994 = vsel %vm992, %v987, %v989
        %v995 = vsel %vm992, %v989, %v991
        %v1001 = vmul.bf16 %v280, %v985
        %v1002 = vmul.bf16 %v281, %v993
        %v1003 = vmul.bf16 %v282, %v994
        %v1004 = vmul.bf16 %v283, %v995
        %v1005 = vmul.bf16 %v284, %v991
        %1006 = vrot.lane.b32.xlu0 %v633, 1
        %v1007 = vpop.permute.xlu0 %1006
        %1008 = vrot.lane.b32.xlu0 %v640, 1
        %v1009 = vpop.permute.xlu0 %1008
        %1010 = vrot.lane.b32.xlu0 %v647, 1
        %v1011 = vpop.permute.xlu0 %1010
        %1012 = vrot.lane.b32.xlu0 %v654, 1
        %v1013 = vpop.permute.xlu0 %1012
        %vm1014 = vcmask 7168
        %v1015 = vsel %vm1014, %v1007, %v1009
        %v1016 = vsel %vm1014, %v1009, %v1011
        %v1017 = vsel %vm1014, %v1011, %v1013
        %v1023 = vmul.bf16 %v281, %v1007
        %v1024 = vmul.bf16 %v282, %v1015
        %v1025 = vmul.bf16 %v283, %v1016
        %v1026 = vmul.bf16 %v284, %v1017
        %v1027 = vmul.bf16 %v285, %v1013
        %1028 = vrot.lane.b32.xlu0 %v712, 7
        %v1029 = vpop.permute.xlu0 %1028
        %1030 = vrot.lane.b32.xlu0 %v719, 7
        %v1031 = vpop.permute.xlu0 %1030
        %1032 = vrot.lane.b32.xlu0 %v726, 7
        %v1033 = vpop.permute.xlu0 %1032
        %1034 = vrot.lane.b32.xlu0 %v733, 7
        %v1035 = vpop.permute.xlu0 %1034
        %vm1036 = vcmask 56320
        %v1037 = vsel %vm1036, %v1029, %v1031
        %v1038 = vsel %vm1036, %v1031, %v1033
        %v1039 = vsel %vm1036, %v1033, %v1035
        %v1045 = vmul.bf16 %v281, %v1029
        %v1046 = vmul.bf16 %v282, %v1037
        %v1047 = vmul.bf16 %v283, %v1038
        %v1048 = vmul.bf16 %v284, %v1039
        %v1049 = vmul.bf16 %v285, %v1035
        %1050 = vrot.lane.b32.xlu0 %v791, 8
        %v1051 = vpop.permute.xlu0 %1050
        %1052 = vrot.lane.b32.xlu0 %v798, 8
        %v1053 = vpop.permute.xlu0 %1052
        %1054 = vrot.lane.b32.xlu0 %v805, 8
        %v1055 = vpop.permute.xlu0 %1054
        %1056 = vrot.lane.b32.xlu0 %v812, 8
        %v1057 = vpop.permute.xlu0 %1056
        %vm1058 = vcmask 64512
        %v1059 = vsel %vm1058, %v1051, %v1053
        %v1060 = vsel %vm1058, %v1053, %v1055
        %v1061 = vsel %vm1058, %v1055, %v1057
        %v1067 = vmul.bf16 %v281, %v1051
        %v1068 = vmul.bf16 %v282, %v1059
        %v1069 = vmul.bf16 %v283, %v1060
        %v1070 = vmul.bf16 %v284, %v1061
        %v1071 = vmul.bf16 %v285, %v1057
        %1072 = vrot.lane.b32.xlu0 %v870, 9
        %v1073 = vpop.permute.xlu0 %1072
        %1074 = vrot.lane.b32.xlu0 %v877, 9
        %v1075 = vpop.permute.xlu0 %1074
        %1076 = vrot.lane.b32.xlu0 %v884, 9
        %v1077 = vpop.permute.xlu0 %1076
        %1078 = vrot.lane.b32.xlu0 %v891, 9
        %v1079 = vpop.permute.xlu0 %1078
        %vm1080 = vcmask 72704
        %v1081 = vsel %vm1080, %v1073, %v1075
        %v1082 = vsel %vm1080, %v1075, %v1077
        %v1083 = vsel %vm1080, %v1077, %v1079
        %v1089 = vmul.bf16 %v281, %v1073
        %v1090 = vmul.bf16 %v282, %v1081
        %v1091 = vmul.bf16 %v283, %v1082
        %v1092 = vmul.bf16 %v284, %v1083
        %v1093 = vmul.bf16 %v285, %v1079
        %v1094 = vmul.bf16 %v281, %v344
        %v1095 = vmul.bf16 %v282, %v352
        %v1096 = vmul.bf16 %v283, %v353
        %v1097 = vmul.bf16 %v284, %v354
        %v1098 = vmul.bf16 %v285, %v350
        %v1099 = vmul.bf16 %v281, %v423
        %v1100 = vmul.bf16 %v282, %v431
        %v1101 = vmul.bf16 %v283, %v432
        %v1102 = vmul.bf16 %v284, %v433
        %v1103 = vmul.bf16 %v285, %v429
        %v1104 = vmul.bf16 %v281, %v502
        %v1105 = vmul.bf16 %v282, %v510
        %v1106 = vmul.bf16 %v283, %v511
        %v1107 = vmul.bf16 %v284, %v512
        %v1108 = vmul.bf16 %v285, %v508
        %v1109 = vmul.bf16 %v281, %v581
        %v1110 = vmul.bf16 %v282, %v589
        %v1111 = vmul.bf16 %v283, %v590
        %v1112 = vmul.bf16 %v284, %v591
        %v1113 = vmul.bf16 %v285, %v587
        %v1114 = vmul.bf16 %v281, %v660
        %v1115 = vmul.bf16 %v282, %v668
        %v1116 = vmul.bf16 %v283, %v669
        %v1117 = vmul.bf16 %v284, %v670
        %v1118 = vmul.bf16 %v285, %v666
        %v1119 = vmul.bf16 %v281, %v739
        %v1120 = vmul.bf16 %v282, %v747
        %v1121 = vmul.bf16 %v283, %v748
        %v1122 = vmul.bf16 %v284, %v749
        %v1123 = vmul.bf16 %v285, %v745
        %v1124 = vmul.bf16 %v281, %v818
        %v1125 = vmul.bf16 %v282, %v826
        %v1126 = vmul.bf16 %v283, %v827
        %v1127 = vmul.bf16 %v284, %v828
        %v1128 = vmul.bf16 %v285, %v824
        %v1129 = vmul.bf16 %v281, %v897
        %v1130 = vmul.bf16 %v282, %v905
        %v1131 = vmul.bf16 %v283, %v906
        %v1132 = vmul.bf16 %v284, %v907
        %v1133 = vmul.bf16 %v285, %v903
        %1139 = vrot.lane.b32.xlu0 %v439, 127
        %v1140 = vpop.permute.xlu0 %1139
        %1141 = vrot.lane.b32.xlu0 %v440, 127
        %v1142 = vpop.permute.xlu0 %1141
        %1143 = vrot.lane.b32.xlu0 %v441, 127
        %v1144 = vpop.permute.xlu0 %1143
        %1145 = vrot.lane.b32.xlu0 %v442, 127
        %v1146 = vpop.permute.xlu0 %1145
        %1147 = vrot.lane.b32.xlu0 %v443, 127
        %v1148 = vpop.permute.xlu0 %1147
        %v1149 = vsel %vm992, %v1140, %v1142
        %v1150 = vsel %vm992, %v1142, %v1144
        %v1151 = vsel %vm992, %v1144, %v1146
        %v1152 = vsel %vm992, %v1146, %v1148
        %1158 = vrot.lane.b32.xlu0 %v518, 126
        %v1159 = vpop.permute.xlu0 %1158
        %1160 = vrot.lane.b32.xlu0 %v519, 126
        %v1161 = vpop.permute.xlu0 %1160
        %1162 = vrot.lane.b32.xlu0 %v520, 126
        %v1163 = vpop.permute.xlu0 %1162
        %1164 = vrot.lane.b32.xlu0 %v521, 126
        %v1165 = vpop.permute.xlu0 %1164
        %1166 = vrot.lane.b32.xlu0 %v522, 126
        %v1167 = vpop.permute.xlu0 %1166
        %vm1168 = vcmask 1031168
        %v1169 = vsel %vm1168, %v1159, %v1161
        %v1170 = vsel %vm1168, %v1161, %v1163
        %v1171 = vsel %vm1168, %v1163, %v1165
        %v1172 = vsel %vm1168, %v1165, %v1167
        %1178 = vrot.lane.b32.xlu0 %v597, 120
        %v1179 = vpop.permute.xlu0 %1178
        %1180 = vrot.lane.b32.xlu0 %v598, 120
        %v1181 = vpop.permute.xlu0 %1180
        %1182 = vrot.lane.b32.xlu0 %v599, 120
        %v1183 = vpop.permute.xlu0 %1182
        %1184 = vrot.lane.b32.xlu0 %v600, 120
        %v1185 = vpop.permute.xlu0 %1184
        %1186 = vrot.lane.b32.xlu0 %v601, 120
        %v1187 = vpop.permute.xlu0 %1186
        %v1188 = vsel %vm948, %v1179, %v1181
        %v1189 = vsel %vm948, %v1181, %v1183
        %v1190 = vsel %vm948, %v1183, %v1185
        %v1191 = vsel %vm948, %v1185, %v1187
        %1197 = vrot.lane.b32.xlu0 %v280, 119
        %v1198 = vpop.permute.xlu0 %1197
        %1199 = vrot.lane.b32.xlu0 %v281, 119
        %v1200 = vpop.permute.xlu0 %1199
        %1201 = vrot.lane.b32.xlu0 %v282, 119
        %v1202 = vpop.permute.xlu0 %1201
        %1203 = vrot.lane.b32.xlu0 %v283, 119
        %v1204 = vpop.permute.xlu0 %1203
        %1205 = vrot.lane.b32.xlu0 %v284, 119
        %v1206 = vpop.permute.xlu0 %1205
        %v1207 = vsel %vm926, %v1198, %v1200
        %v1208 = vsel %vm926, %v1200, %v1202
        %v1209 = vsel %vm926, %v1202, %v1204
        %v1210 = vsel %vm926, %v1204, %v1206
        %1216 = vrot.lane.b32.xlu0 %v676, 118
        %v1217 = vpop.permute.xlu0 %1216
        %1218 = vrot.lane.b32.xlu0 %v677, 118
        %v1219 = vpop.permute.xlu0 %1218
        %1220 = vrot.lane.b32.xlu0 %v678, 118
        %v1221 = vpop.permute.xlu0 %1220
        %1222 = vrot.lane.b32.xlu0 %v679, 118
        %v1223 = vpop.permute.xlu0 %1222
        %1224 = vrot.lane.b32.xlu0 %v680, 118
        %v1225 = vpop.permute.xlu0 %1224
        %vm1226 = vcmask 965632
        %v1227 = vsel %vm1226, %v1217, %v1219
        %v1228 = vsel %vm1226, %v1219, %v1221
        %v1229 = vsel %vm1226, %v1221, %v1223
        %v1230 = vsel %vm1226, %v1223, %v1225
        %1236 = vrot.lane.b32.xlu0 %v755, 112
        %v1237 = vpop.permute.xlu0 %1236
        %1238 = vrot.lane.b32.xlu0 %v756, 112
        %v1239 = vpop.permute.xlu0 %1238
        %1240 = vrot.lane.b32.xlu0 %v757, 112
        %v1241 = vpop.permute.xlu0 %1240
        %1242 = vrot.lane.b32.xlu0 %v758, 112
        %v1243 = vpop.permute.xlu0 %1242
        %1244 = vrot.lane.b32.xlu0 %v759, 112
        %v1245 = vpop.permute.xlu0 %1244
        %vm1246 = vcmask 916480
        %v1247 = vsel %vm1246, %v1237, %v1239
        %v1248 = vsel %vm1246, %v1239, %v1241
        %v1249 = vsel %vm1246, %v1241, %v1243
        %v1250 = vsel %vm1246, %v1243, %v1245
        %1256 = vrot.lane.b32.xlu0 %v834, 111
        %v1257 = vpop.permute.xlu0 %1256
        %1258 = vrot.lane.b32.xlu0 %v835, 111
        %v1259 = vpop.permute.xlu0 %1258
        %1260 = vrot.lane.b32.xlu0 %v836, 111
        %v1261 = vpop.permute.xlu0 %1260
        %1262 = vrot.lane.b32.xlu0 %v837, 111
        %v1263 = vpop.permute.xlu0 %1262
        %1264 = vrot.lane.b32.xlu0 %v838, 111
        %v1265 = vpop.permute.xlu0 %1264
        %vm1266 = vcmask 908288
        %v1267 = vsel %vm1266, %v1257, %v1259
        %v1268 = vsel %vm1266, %v1259, %v1261
        %v1269 = vsel %vm1266, %v1261, %v1263
        %v1270 = vsel %vm1266, %v1263, %v1265
        %1276 = vrot.lane.b32.xlu0 %v913, 110
        %v1277 = vpop.permute.xlu0 %1276
        %1278 = vrot.lane.b32.xlu0 %v914, 110
        %v1279 = vpop.permute.xlu0 %1278
        %1280 = vrot.lane.b32.xlu0 %v915, 110
        %v1281 = vpop.permute.xlu0 %1280
        %1282 = vrot.lane.b32.xlu0 %v916, 110
        %v1283 = vpop.permute.xlu0 %1282
        %1284 = vrot.lane.b32.xlu0 %v917, 110
        %v1285 = vpop.permute.xlu0 %1284
        %vm1286 = vcmask 900096
        %v1287 = vsel %vm1286, %v1277, %v1279
        %v1288 = vsel %vm1286, %v1279, %v1281
        %v1289 = vsel %vm1286, %v1281, %v1283
        %v1290 = vsel %vm1286, %v1283, %v1285
        %1296 = vrot.lane.b32.xlu0 %v935, 64
        %v1297 = vpop.permute.xlu0 %1296
        %1298 = vrot.lane.b32.xlu0 %v936, 64
        %v1299 = vpop.permute.xlu0 %1298
        %1300 = vrot.lane.b32.xlu0 %v937, 64
        %v1301 = vpop.permute.xlu0 %1300
        %1302 = vrot.lane.b32.xlu0 %v938, 64
        %v1303 = vpop.permute.xlu0 %1302
        %1304 = vrot.lane.b32.xlu0 %v939, 64
        %v1305 = vpop.permute.xlu0 %1304
        %vm1306 = vcmask 523264
        %v1307 = vsel %vm1306, %v1297, %v1299
        %v1308 = vsel %vm1306, %v1299, %v1301
        %v1309 = vsel %vm1306, %v1301, %v1303
        %v1310 = vsel %vm1306, %v1303, %v1305
        %1316 = vrot.lane.b32.xlu0 %v957, 63
        %v1317 = vpop.permute.xlu0 %1316
        %1318 = vrot.lane.b32.xlu0 %v958, 63
        %v1319 = vpop.permute.xlu0 %1318
        %1320 = vrot.lane.b32.xlu0 %v959, 63
        %v1321 = vpop.permute.xlu0 %1320
        %1322 = vrot.lane.b32.xlu0 %v960, 63
        %v1323 = vpop.permute.xlu0 %1322
        %1324 = vrot.lane.b32.xlu0 %v961, 63
        %v1325 = vpop.permute.xlu0 %1324
        %v1326 = vsel %vm588, %v1317, %v1319
        %v1327 = vsel %vm588, %v1319, %v1321
        %v1328 = vsel %vm588, %v1321, %v1323
        %v1329 = vsel %vm588, %v1323, %v1325
        %1335 = vrot.lane.b32.xlu0 %v979, 62
        %v1336 = vpop.permute.xlu0 %1335
        %1337 = vrot.lane.b32.xlu0 %v980, 62
        %v1338 = vpop.permute.xlu0 %1337
        %1339 = vrot.lane.b32.xlu0 %v981, 62
        %v1340 = vpop.permute.xlu0 %1339
        %1341 = vrot.lane.b32.xlu0 %v982, 62
        %v1342 = vpop.permute.xlu0 %1341
        %1343 = vrot.lane.b32.xlu0 %v983, 62
        %v1344 = vpop.permute.xlu0 %1343
        %vm1345 = vcmask 506880
        %v1346 = vsel %vm1345, %v1336, %v1338
        %v1347 = vsel %vm1345, %v1338, %v1340
        %v1348 = vsel %vm1345, %v1340, %v1342
        %v1349 = vsel %vm1345, %v1342, %v1344
        %1355 = vrot.lane.b32.xlu0 %v1001, 56
        %v1356 = vpop.permute.xlu0 %1355
        %1357 = vrot.lane.b32.xlu0 %v1002, 56
        %v1358 = vpop.permute.xlu0 %1357
        %1359 = vrot.lane.b32.xlu0 %v1003, 56
        %v1360 = vpop.permute.xlu0 %1359
        %1361 = vrot.lane.b32.xlu0 %v1004, 56
        %v1362 = vpop.permute.xlu0 %1361
        %1363 = vrot.lane.b32.xlu0 %v1005, 56
        %v1364 = vpop.permute.xlu0 %1363
        %v1365 = vsel %vm430, %v1356, %v1358
        %v1366 = vsel %vm430, %v1358, %v1360
        %v1367 = vsel %vm430, %v1360, %v1362
        %v1368 = vsel %vm430, %v1362, %v1364
        %1369 = vrot.lane.b32.xlu0 %v281, 55
        %v1370 = vpop.permute.xlu0 %1369
        %1371 = vrot.lane.b32.xlu0 %v282, 55
        %v1372 = vpop.permute.xlu0 %1371
        %1373 = vrot.lane.b32.xlu0 %v283, 55
        %v1374 = vpop.permute.xlu0 %1373
        %1375 = vrot.lane.b32.xlu0 %v284, 55
        %v1376 = vpop.permute.xlu0 %1375
        %v1377 = vsel %vm351, %v1370, %v1372
        %v1378 = vsel %vm351, %v1372, %v1374
        %v1379 = vsel %vm351, %v1374, %v1376
        %1385 = vrot.lane.b32.xlu0 %v1023, 54
        %v1386 = vpop.permute.xlu0 %1385
        %1387 = vrot.lane.b32.xlu0 %v1024, 54
        %v1388 = vpop.permute.xlu0 %1387
        %1389 = vrot.lane.b32.xlu0 %v1025, 54
        %v1390 = vpop.permute.xlu0 %1389
        %1391 = vrot.lane.b32.xlu0 %v1026, 54
        %v1392 = vpop.permute.xlu0 %1391
        %1393 = vrot.lane.b32.xlu0 %v1027, 54
        %v1394 = vpop.permute.xlu0 %1393
        %vm1395 = vcmask 441344
        %v1396 = vsel %vm1395, %v1386, %v1388
        %v1397 = vsel %vm1395, %v1388, %v1390
        %v1398 = vsel %vm1395, %v1390, %v1392
        %v1399 = vsel %vm1395, %v1392, %v1394
        %1405 = vrot.lane.b32.xlu0 %v1045, 48
        %v1406 = vpop.permute.xlu0 %1405
        %1407 = vrot.lane.b32.xlu0 %v1046, 48
        %v1408 = vpop.permute.xlu0 %1407
        %1409 = vrot.lane.b32.xlu0 %v1047, 48
        %v1410 = vpop.permute.xlu0 %1409
        %1411 = vrot.lane.b32.xlu0 %v1048, 48
        %v1412 = vpop.permute.xlu0 %1411
        %1413 = vrot.lane.b32.xlu0 %v1049, 48
        %v1414 = vpop.permute.xlu0 %1413
        %vm1415 = vcmask 392192
        %v1416 = vsel %vm1415, %v1406, %v1408
        %v1417 = vsel %vm1415, %v1408, %v1410
        %v1418 = vsel %vm1415, %v1410, %v1412
        %v1419 = vsel %vm1415, %v1412, %v1414
        %1425 = vrot.lane.b32.xlu0 %v1089, 127
        %v1426 = vpop.permute.xlu0 %1425
        %1427 = vrot.lane.b32.xlu0 %v1090, 127
        %v1428 = vpop.permute.xlu0 %1427
        %1429 = vrot.lane.b32.xlu0 %v1091, 127
        %v1430 = vpop.permute.xlu0 %1429
        %1431 = vrot.lane.b32.xlu0 %v1092, 127
        %v1432 = vpop.permute.xlu0 %1431
        %1433 = vrot.lane.b32.xlu0 %v1093, 127
        %v1434 = vpop.permute.xlu0 %1433
        %v1435 = vsel %vm992, %v1426, %v1428
        %v1436 = vsel %vm992, %v1428, %v1430
        %v1437 = vsel %vm992, %v1430, %v1432
        %v1438 = vsel %vm992, %v1432, %v1434
        %1444 = vrot.lane.b32.xlu0 %v1094, 81
        %v1445 = vpop.permute.xlu0 %1444
        %1446 = vrot.lane.b32.xlu0 %v1095, 81
        %v1447 = vpop.permute.xlu0 %1446
        %1448 = vrot.lane.b32.xlu0 %v1096, 81
        %v1449 = vpop.permute.xlu0 %1448
        %1450 = vrot.lane.b32.xlu0 %v1097, 81
        %v1451 = vpop.permute.xlu0 %1450
        %1452 = vrot.lane.b32.xlu0 %v1098, 81
        %v1453 = vpop.permute.xlu0 %1452
        %vm1454 = vcmask 662528
        %v1455 = vsel %vm1454, %v1445, %v1447
        %v1456 = vsel %vm1454, %v1447, %v1449
        %v1457 = vsel %vm1454, %v1449, %v1451
        %v1458 = vsel %vm1454, %v1451, %v1453
        %1464 = vrot.lane.b32.xlu0 %v1099, 80
        %v1465 = vpop.permute.xlu0 %1464
        %1466 = vrot.lane.b32.xlu0 %v1100, 80
        %v1467 = vpop.permute.xlu0 %1466
        %1468 = vrot.lane.b32.xlu0 %v1101, 80
        %v1469 = vpop.permute.xlu0 %1468
        %1470 = vrot.lane.b32.xlu0 %v1102, 80
        %v1471 = vpop.permute.xlu0 %1470
        %1472 = vrot.lane.b32.xlu0 %v1103, 80
        %v1473 = vpop.permute.xlu0 %1472
        %vm1474 = vcmask 654336
        %v1475 = vsel %vm1474, %v1465, %v1467
        %v1476 = vsel %vm1474, %v1467, %v1469
        %v1477 = vsel %vm1474, %v1469, %v1471
        %v1478 = vsel %vm1474, %v1471, %v1473
        %1484 = vrot.lane.b32.xlu0 %v1104, 79
        %v1485 = vpop.permute.xlu0 %1484
        %1486 = vrot.lane.b32.xlu0 %v1105, 79
        %v1487 = vpop.permute.xlu0 %1486
        %1488 = vrot.lane.b32.xlu0 %v1106, 79
        %v1489 = vpop.permute.xlu0 %1488
        %1490 = vrot.lane.b32.xlu0 %v1107, 79
        %v1491 = vpop.permute.xlu0 %1490
        %1492 = vrot.lane.b32.xlu0 %v1108, 79
        %v1493 = vpop.permute.xlu0 %1492
        %vm1494 = vcmask 646144
        %v1495 = vsel %vm1494, %v1485, %v1487
        %v1496 = vsel %vm1494, %v1487, %v1489
        %v1497 = vsel %vm1494, %v1489, %v1491
        %v1498 = vsel %vm1494, %v1491, %v1493
        %1504 = vrot.lane.b32.xlu0 %v1109, 73
        %v1505 = vpop.permute.xlu0 %1504
        %1506 = vrot.lane.b32.xlu0 %v1110, 73
        %v1507 = vpop.permute.xlu0 %1506
        %1508 = vrot.lane.b32.xlu0 %v1111, 73
        %v1509 = vpop.permute.xlu0 %1508
        %1510 = vrot.lane.b32.xlu0 %v1112, 73
        %v1511 = vpop.permute.xlu0 %1510
        %1512 = vrot.lane.b32.xlu0 %v1113, 73
        %v1513 = vpop.permute.xlu0 %1512
        %v1514 = vsel %vm904, %v1505, %v1507
        %v1515 = vsel %vm904, %v1507, %v1509
        %v1516 = vsel %vm904, %v1509, %v1511
        %v1517 = vsel %vm904, %v1511, %v1513
        %1519 = vrot.lane.b32.xlu0 %v281, 72
        %v1520 = vpop.permute.xlu0 %1519
        %1521 = vrot.lane.b32.xlu0 %v282, 72
        %v1522 = vpop.permute.xlu0 %1521
        %1523 = vrot.lane.b32.xlu0 %v283, 72
        %v1524 = vpop.permute.xlu0 %1523
        %1525 = vrot.lane.b32.xlu0 %v284, 72
        %v1526 = vpop.permute.xlu0 %1525
        %1527 = vrot.lane.b32.xlu0 %v285, 72
        %v1528 = vpop.permute.xlu0 %1527
        %v1529 = vsel %vm825, %v1520, %v1522
        %v1530 = vsel %vm825, %v1522, %v1524
        %v1531 = vsel %vm825, %v1524, %v1526
        %v1532 = vsel %vm825, %v1526, %v1528
        %1538 = vrot.lane.b32.xlu0 %v1114, 71
        %v1539 = vpop.permute.xlu0 %1538
        %1540 = vrot.lane.b32.xlu0 %v1115, 71
        %v1541 = vpop.permute.xlu0 %1540
        %1542 = vrot.lane.b32.xlu0 %v1116, 71
        %v1543 = vpop.permute.xlu0 %1542
        %1544 = vrot.lane.b32.xlu0 %v1117, 71
        %v1545 = vpop.permute.xlu0 %1544
        %1546 = vrot.lane.b32.xlu0 %v1118, 71
        %v1547 = vpop.permute.xlu0 %1546
        %v1548 = vsel %vm746, %v1539, %v1541
        %v1549 = vsel %vm746, %v1541, %v1543
        %v1550 = vsel %vm746, %v1543, %v1545
        %v1551 = vsel %vm746, %v1545, %v1547
        %1557 = vrot.lane.b32.xlu0 %v1119, 65
        %v1558 = vpop.permute.xlu0 %1557
        %1559 = vrot.lane.b32.xlu0 %v1120, 65
        %v1560 = vpop.permute.xlu0 %1559
        %1561 = vrot.lane.b32.xlu0 %v1121, 65
        %v1562 = vpop.permute.xlu0 %1561
        %1563 = vrot.lane.b32.xlu0 %v1122, 65
        %v1564 = vpop.permute.xlu0 %1563
        %1565 = vrot.lane.b32.xlu0 %v1123, 65
        %v1566 = vpop.permute.xlu0 %1565
        %v1567 = vsel %vm667, %v1558, %v1560
        %v1568 = vsel %vm667, %v1560, %v1562
        %v1569 = vsel %vm667, %v1562, %v1564
        %v1570 = vsel %vm667, %v1564, %v1566
        %1576 = vrot.lane.b32.xlu0 %v1124, 64
        %v1577 = vpop.permute.xlu0 %1576
        %1578 = vrot.lane.b32.xlu0 %v1125, 64
        %v1579 = vpop.permute.xlu0 %1578
        %1580 = vrot.lane.b32.xlu0 %v1126, 64
        %v1581 = vpop.permute.xlu0 %1580
        %1582 = vrot.lane.b32.xlu0 %v1127, 64
        %v1583 = vpop.permute.xlu0 %1582
        %1584 = vrot.lane.b32.xlu0 %v1128, 64
        %v1585 = vpop.permute.xlu0 %1584
        %v1586 = vsel %vm1306, %v1577, %v1579
        %v1587 = vsel %vm1306, %v1579, %v1581
        %v1588 = vsel %vm1306, %v1581, %v1583
        %v1589 = vsel %vm1306, %v1583, %v1585
        %1595 = vrot.lane.b32.xlu0 %v1129, 63
        %v1596 = vpop.permute.xlu0 %1595
        %1597 = vrot.lane.b32.xlu0 %v1130, 63
        %v1598 = vpop.permute.xlu0 %1597
        %1599 = vrot.lane.b32.xlu0 %v1131, 63
        %v1600 = vpop.permute.xlu0 %1599
        %1601 = vrot.lane.b32.xlu0 %v1132, 63
        %v1602 = vpop.permute.xlu0 %1601
        %1603 = vrot.lane.b32.xlu0 %v1133, 63
        %v1604 = vpop.permute.xlu0 %1603
        %v1605 = vsel %vm588, %v1596, %v1598
        %v1606 = vsel %vm588, %v1598, %v1600
        %v1607 = vsel %vm588, %v1600, %v1602
        %v1608 = vsel %vm588, %v1602, %v1604
        %1614 = vrot.lane.b32.xlu0 %v1067, 47
        %v1615 = vpop.permute.xlu0 %1614
        %1616 = vrot.lane.b32.xlu0 %v1068, 47
        %v1617 = vpop.permute.xlu0 %1616
        %1618 = vrot.lane.b32.xlu0 %v1069, 47
        %v1619 = vpop.permute.xlu0 %1618
        %1620 = vrot.lane.b32.xlu0 %v1070, 47
        %v1621 = vpop.permute.xlu0 %1620
        %1622 = vrot.lane.b32.xlu0 %v1071, 47
        %v1623 = vpop.permute.xlu0 %1622
        %1624 = vrot.lane.b32.xlu0 %v1435, 47
        %v1625 = vpop.permute.xlu0 %1624
        %1626 = vrot.lane.b32.xlu0 %v1436, 47
        %v1627 = vpop.permute.xlu0 %1626
        %1628 = vrot.lane.b32.xlu0 %v1437, 47
        %v1629 = vpop.permute.xlu0 %1628
        %1630 = vrot.lane.b32.xlu0 %v1438, 47
        %v1631 = vpop.permute.xlu0 %1630
        %1632 = vrot.lane.b32.xlu0 %v1434, 47
        %v1633 = vpop.permute.xlu0 %1632
        %1634 = vrot.lane.b32.xlu0 %v1455, 47
        %v1635 = vpop.permute.xlu0 %1634
        %1636 = vrot.lane.b32.xlu0 %v1456, 47
        %v1637 = vpop.permute.xlu0 %1636
        %1638 = vrot.lane.b32.xlu0 %v1457, 47
        %v1639 = vpop.permute.xlu0 %1638
        %1640 = vrot.lane.b32.xlu0 %v1458, 47
        %v1641 = vpop.permute.xlu0 %1640
        %1642 = vrot.lane.b32.xlu0 %v1453, 47
        %v1643 = vpop.permute.xlu0 %1642
        %1644 = vrot.lane.b32.xlu0 %v1475, 47
        %v1645 = vpop.permute.xlu0 %1644
        %1646 = vrot.lane.b32.xlu0 %v1476, 47
        %v1647 = vpop.permute.xlu0 %1646
        %1648 = vrot.lane.b32.xlu0 %v1477, 47
        %v1649 = vpop.permute.xlu0 %1648
        %1650 = vrot.lane.b32.xlu0 %v1478, 47
        %v1651 = vpop.permute.xlu0 %1650
        %1652 = vrot.lane.b32.xlu0 %v1473, 47
        %v1653 = vpop.permute.xlu0 %1652
        %1654 = vrot.lane.b32.xlu0 %v1495, 47
        %v1655 = vpop.permute.xlu0 %1654
        %1656 = vrot.lane.b32.xlu0 %v1496, 47
        %v1657 = vpop.permute.xlu0 %1656
        %1658 = vrot.lane.b32.xlu0 %v1497, 47
        %v1659 = vpop.permute.xlu0 %1658
        %1660 = vrot.lane.b32.xlu0 %v1498, 47
        %v1661 = vpop.permute.xlu0 %1660
        %1662 = vrot.lane.b32.xlu0 %v1493, 47
        %v1663 = vpop.permute.xlu0 %1662
        %1664 = vrot.lane.b32.xlu0 %v1514, 47
        %v1665 = vpop.permute.xlu0 %1664
        %1666 = vrot.lane.b32.xlu0 %v1515, 47
        %v1667 = vpop.permute.xlu0 %1666
        %1668 = vrot.lane.b32.xlu0 %v1516, 47
        %v1669 = vpop.permute.xlu0 %1668
        %1670 = vrot.lane.b32.xlu0 %v1517, 47
        %v1671 = vpop.permute.xlu0 %1670
        %1672 = vrot.lane.b32.xlu0 %v1513, 47
        %v1673 = vpop.permute.xlu0 %1672
        %1674 = vrot.lane.b32.xlu0 %v1529, 47
        %v1675 = vpop.permute.xlu0 %1674
        %1676 = vrot.lane.b32.xlu0 %v1530, 47
        %v1677 = vpop.permute.xlu0 %1676
        %1678 = vrot.lane.b32.xlu0 %v1531, 47
        %v1679 = vpop.permute.xlu0 %1678
        %1680 = vrot.lane.b32.xlu0 %v1532, 47
        %v1681 = vpop.permute.xlu0 %1680
        %1682 = vrot.lane.b32.xlu0 %v1528, 47
        %v1683 = vpop.permute.xlu0 %1682
        %1684 = vrot.lane.b32.xlu0 %v1548, 47
        %v1685 = vpop.permute.xlu0 %1684
        %1686 = vrot.lane.b32.xlu0 %v1549, 47
        %v1687 = vpop.permute.xlu0 %1686
        %1688 = vrot.lane.b32.xlu0 %v1550, 47
        %v1689 = vpop.permute.xlu0 %1688
        %1690 = vrot.lane.b32.xlu0 %v1551, 47
        %v1691 = vpop.permute.xlu0 %1690
        %1692 = vrot.lane.b32.xlu0 %v1547, 47
        %v1693 = vpop.permute.xlu0 %1692
        %1694 = vrot.lane.b32.xlu0 %v1567, 47
        %v1695 = vpop.permute.xlu0 %1694
        %1696 = vrot.lane.b32.xlu0 %v1568, 47
        %v1697 = vpop.permute.xlu0 %1696
        %1698 = vrot.lane.b32.xlu0 %v1569, 47
        %v1699 = vpop.permute.xlu0 %1698
        %1700 = vrot.lane.b32.xlu0 %v1570, 47
        %v1701 = vpop.permute.xlu0 %1700
        %1702 = vrot.lane.b32.xlu0 %v1566, 47
        %v1703 = vpop.permute.xlu0 %1702
        %1704 = vrot.lane.b32.xlu0 %v1586, 47
        %v1705 = vpop.permute.xlu0 %1704
        %1706 = vrot.lane.b32.xlu0 %v1587, 47
        %v1707 = vpop.permute.xlu0 %1706
        %1708 = vrot.lane.b32.xlu0 %v1588, 47
        %v1709 = vpop.permute.xlu0 %1708
        %1710 = vrot.lane.b32.xlu0 %v1589, 47
        %v1711 = vpop.permute.xlu0 %1710
        %1712 = vrot.lane.b32.xlu0 %v1585, 47
        %v1713 = vpop.permute.xlu0 %1712
        %1714 = vrot.lane.b32.xlu0 %v1605, 47
        %v1715 = vpop.permute.xlu0 %1714
        %1716 = vrot.lane.b32.xlu0 %v1606, 47
        %v1717 = vpop.permute.xlu0 %1716
        %1718 = vrot.lane.b32.xlu0 %v1607, 47
        %v1719 = vpop.permute.xlu0 %1718
        %1720 = vrot.lane.b32.xlu0 %v1608, 47
        %v1721 = vpop.permute.xlu0 %1720
        %1722 = vrot.lane.b32.xlu0 %v1604, 47
        %v1723 = vpop.permute.xlu0 %1722
        %vm1724 = vcmask 384000
        %v1725 = vsel %vm1724, %v1615, %v1617
        %v1726 = vsel %vm1724, %v1617, %v1619
        %v1727 = vsel %vm1724, %v1619, %v1621
        %v1728 = vsel %vm1724, %v1621, %v1623
        %v1729 = vsel %vm1724, %v1625, %v1627
        %v1730 = vsel %vm1724, %v1627, %v1629
        %v1731 = vsel %vm1724, %v1629, %v1631
        %v1732 = vsel %vm1724, %v1631, %v1633
        %v1733 = vsel %vm1724, %v1635, %v1637
        %v1734 = vsel %vm1724, %v1637, %v1639
        %v1735 = vsel %vm1724, %v1639, %v1641
        %v1736 = vsel %vm1724, %v1641, %v1643
        %v1737 = vsel %vm1724, %v1645, %v1647
        %v1738 = vsel %vm1724, %v1647, %v1649
        %v1739 = vsel %vm1724, %v1649, %v1651
        %v1740 = vsel %vm1724, %v1651, %v1653
        %v1741 = vsel %vm1724, %v1655, %v1657
        %v1742 = vsel %vm1724, %v1657, %v1659
        %v1743 = vsel %vm1724, %v1659, %v1661
        %v1744 = vsel %vm1724, %v1661, %v1663
        %v1745 = vsel %vm1724, %v1665, %v1667
        %v1746 = vsel %vm1724, %v1667, %v1669
        %v1747 = vsel %vm1724, %v1669, %v1671
        %v1748 = vsel %vm1724, %v1671, %v1673
        %v1749 = vsel %vm1724, %v1675, %v1677
        %v1750 = vsel %vm1724, %v1677, %v1679
        %v1751 = vsel %vm1724, %v1679, %v1681
        %v1752 = vsel %vm1724, %v1681, %v1683
        %v1753 = vsel %vm1724, %v1685, %v1687
        %v1754 = vsel %vm1724, %v1687, %v1689
        %v1755 = vsel %vm1724, %v1689, %v1691
        %v1756 = vsel %vm1724, %v1691, %v1693
        %v1757 = vsel %vm1724, %v1695, %v1697
        %v1758 = vsel %vm1724, %v1697, %v1699
        %v1759 = vsel %vm1724, %v1699, %v1701
        %v1760 = vsel %vm1724, %v1701, %v1703
        %v1761 = vsel %vm1724, %v1705, %v1707
        %v1762 = vsel %vm1724, %v1707, %v1709
        %v1763 = vsel %vm1724, %v1709, %v1711
        %v1764 = vsel %vm1724, %v1711, %v1713
        %v1765 = vsel %vm1724, %v1715, %v1717
        %v1766 = vsel %vm1724, %v1717, %v1719
        %v1767 = vsel %vm1724, %v1719, %v1721
        %v1768 = vsel %vm1724, %v1721, %v1723
        %v1773 = vunpack.c.l.b16 %v272
        %v1774 = vunpack.c.h.b16 %v272
        %v1775 = vunpack.c.l.b16 %v273
        %v1776 = vunpack.c.h.b16 %v273
        %v1777 = vunpack.c.l.b16 %v274
        %v1778 = vunpack.c.h.b16 %v274
        %v1779 = vunpack.c.l.b16 %v275
        %v1780 = vunpack.c.h.b16 %v275
        %v1781 = vpack.c.b16 %v1777, %v1773
        %v1782 = vpack.c.b16 %v1778, %v1774
        %v1783 = vpack.c.b16 %v1779, %v1775
        %v1784 = vpack.c.b16 %v1780, %v1776
        %1793 = vrot.lane.b32.xlu0 %v360, 73
        %v1794 = vpop.permute.xlu0 %1793
        %1795 = vrot.lane.b32.xlu0 %v361, 73
        %v1796 = vpop.permute.xlu0 %1795
        %1797 = vrot.lane.b32.xlu0 %v362, 73
        %v1798 = vpop.permute.xlu0 %1797
        %1799 = vrot.lane.b32.xlu0 %v363, 73
        %v1800 = vpop.permute.xlu0 %1799
        %1801 = vrot.lane.b32.xlu0 %v364, 73
        %v1802 = vpop.permute.xlu0 %1801
        %1803 = vrot.lane.b32.xlu0 %v1149, 73
        %v1804 = vpop.permute.xlu0 %1803
        %1805 = vrot.lane.b32.xlu0 %v1150, 73
        %v1806 = vpop.permute.xlu0 %1805
        %1807 = vrot.lane.b32.xlu0 %v1151, 73
        %v1808 = vpop.permute.xlu0 %1807
        %1809 = vrot.lane.b32.xlu0 %v1152, 73
        %v1810 = vpop.permute.xlu0 %1809
        %1811 = vrot.lane.b32.xlu0 %v1148, 73
        %v1812 = vpop.permute.xlu0 %1811
        %1813 = vrot.lane.b32.xlu0 %v1169, 73
        %v1814 = vpop.permute.xlu0 %1813
        %1815 = vrot.lane.b32.xlu0 %v1170, 73
        %v1816 = vpop.permute.xlu0 %1815
        %1817 = vrot.lane.b32.xlu0 %v1171, 73
        %v1818 = vpop.permute.xlu0 %1817
        %1819 = vrot.lane.b32.xlu0 %v1172, 73
        %v1820 = vpop.permute.xlu0 %1819
        %1821 = vrot.lane.b32.xlu0 %v1167, 73
        %v1822 = vpop.permute.xlu0 %1821
        %1823 = vrot.lane.b32.xlu0 %v1188, 73
        %v1824 = vpop.permute.xlu0 %1823
        %1825 = vrot.lane.b32.xlu0 %v1189, 73
        %v1826 = vpop.permute.xlu0 %1825
        %1827 = vrot.lane.b32.xlu0 %v1190, 73
        %v1828 = vpop.permute.xlu0 %1827
        %1829 = vrot.lane.b32.xlu0 %v1191, 73
        %v1830 = vpop.permute.xlu0 %1829
        %1831 = vrot.lane.b32.xlu0 %v1187, 73
        %v1832 = vpop.permute.xlu0 %1831
        %1833 = vrot.lane.b32.xlu0 %v1207, 73
        %v1834 = vpop.permute.xlu0 %1833
        %1835 = vrot.lane.b32.xlu0 %v1208, 73
        %v1836 = vpop.permute.xlu0 %1835
        %1837 = vrot.lane.b32.xlu0 %v1209, 73
        %v1838 = vpop.permute.xlu0 %1837
        %1839 = vrot.lane.b32.xlu0 %v1210, 73
        %v1840 = vpop.permute.xlu0 %1839
        %1841 = vrot.lane.b32.xlu0 %v1206, 73
        %v1842 = vpop.permute.xlu0 %1841
        %1843 = vrot.lane.b32.xlu0 %v1227, 73
        %v1844 = vpop.permute.xlu0 %1843
        %1845 = vrot.lane.b32.xlu0 %v1228, 73
        %v1846 = vpop.permute.xlu0 %1845
        %1847 = vrot.lane.b32.xlu0 %v1229, 73
        %v1848 = vpop.permute.xlu0 %1847
        %1849 = vrot.lane.b32.xlu0 %v1230, 73
        %v1850 = vpop.permute.xlu0 %1849
        %1851 = vrot.lane.b32.xlu0 %v1225, 73
        %v1852 = vpop.permute.xlu0 %1851
        %1853 = vrot.lane.b32.xlu0 %v1247, 73
        %v1854 = vpop.permute.xlu0 %1853
        %1855 = vrot.lane.b32.xlu0 %v1248, 73
        %v1856 = vpop.permute.xlu0 %1855
        %1857 = vrot.lane.b32.xlu0 %v1249, 73
        %v1858 = vpop.permute.xlu0 %1857
        %1859 = vrot.lane.b32.xlu0 %v1250, 73
        %v1860 = vpop.permute.xlu0 %1859
        %1861 = vrot.lane.b32.xlu0 %v1245, 73
        %v1862 = vpop.permute.xlu0 %1861
        %1863 = vrot.lane.b32.xlu0 %v1267, 73
        %v1864 = vpop.permute.xlu0 %1863
        %1865 = vrot.lane.b32.xlu0 %v1268, 73
        %v1866 = vpop.permute.xlu0 %1865
        %1867 = vrot.lane.b32.xlu0 %v1269, 73
        %v1868 = vpop.permute.xlu0 %1867
        %1869 = vrot.lane.b32.xlu0 %v1270, 73
        %v1870 = vpop.permute.xlu0 %1869
        %1871 = vrot.lane.b32.xlu0 %v1265, 73
        %v1872 = vpop.permute.xlu0 %1871
        %1873 = vrot.lane.b32.xlu0 %v1287, 73
        %v1874 = vpop.permute.xlu0 %1873
        %1875 = vrot.lane.b32.xlu0 %v1288, 73
        %v1876 = vpop.permute.xlu0 %1875
        %1877 = vrot.lane.b32.xlu0 %v1289, 73
        %v1878 = vpop.permute.xlu0 %1877
        %1879 = vrot.lane.b32.xlu0 %v1290, 73
        %v1880 = vpop.permute.xlu0 %1879
        %1881 = vrot.lane.b32.xlu0 %v1285, 73
        %v1882 = vpop.permute.xlu0 %1881
        %1883 = vrot.lane.b32.xlu0 %v1307, 73
        %v1884 = vpop.permute.xlu0 %1883
        %1885 = vrot.lane.b32.xlu0 %v1308, 73
        %v1886 = vpop.permute.xlu0 %1885
        %1887 = vrot.lane.b32.xlu0 %v1309, 73
        %v1888 = vpop.permute.xlu0 %1887
        %1889 = vrot.lane.b32.xlu0 %v1310, 73
        %v1890 = vpop.permute.xlu0 %1889
        %1891 = vrot.lane.b32.xlu0 %v1305, 73
        %v1892 = vpop.permute.xlu0 %1891
        %1893 = vrot.lane.b32.xlu0 %v1326, 73
        %v1894 = vpop.permute.xlu0 %1893
        %1895 = vrot.lane.b32.xlu0 %v1327, 73
        %v1896 = vpop.permute.xlu0 %1895
        %1897 = vrot.lane.b32.xlu0 %v1328, 73
        %v1898 = vpop.permute.xlu0 %1897
        %1899 = vrot.lane.b32.xlu0 %v1329, 73
        %v1900 = vpop.permute.xlu0 %1899
        %1901 = vrot.lane.b32.xlu0 %v1325, 73
        %v1902 = vpop.permute.xlu0 %1901
        %1903 = vrot.lane.b32.xlu0 %v1346, 73
        %v1904 = vpop.permute.xlu0 %1903
        %1905 = vrot.lane.b32.xlu0 %v1347, 73
        %v1906 = vpop.permute.xlu0 %1905
        %1907 = vrot.lane.b32.xlu0 %v1348, 73
        %v1908 = vpop.permute.xlu0 %1907
        %1909 = vrot.lane.b32.xlu0 %v1349, 73
        %v1910 = vpop.permute.xlu0 %1909
        %1911 = vrot.lane.b32.xlu0 %v1344, 73
        %v1912 = vpop.permute.xlu0 %1911
        %1913 = vrot.lane.b32.xlu0 %v1365, 73
        %v1914 = vpop.permute.xlu0 %1913
        %1915 = vrot.lane.b32.xlu0 %v1366, 73
        %v1916 = vpop.permute.xlu0 %1915
        %1917 = vrot.lane.b32.xlu0 %v1367, 73
        %v1918 = vpop.permute.xlu0 %1917
        %1919 = vrot.lane.b32.xlu0 %v1368, 73
        %v1920 = vpop.permute.xlu0 %1919
        %1921 = vrot.lane.b32.xlu0 %v1364, 73
        %v1922 = vpop.permute.xlu0 %1921
        %1923 = vrot.lane.b32.xlu0 %v1370, 73
        %v1924 = vpop.permute.xlu0 %1923
        %1925 = vrot.lane.b32.xlu0 %v1377, 73
        %v1926 = vpop.permute.xlu0 %1925
        %1927 = vrot.lane.b32.xlu0 %v1378, 73
        %v1928 = vpop.permute.xlu0 %1927
        %1929 = vrot.lane.b32.xlu0 %v1379, 73
        %v1930 = vpop.permute.xlu0 %1929
        %1931 = vrot.lane.b32.xlu0 %v1376, 73
        %v1932 = vpop.permute.xlu0 %1931
        %1933 = vrot.lane.b32.xlu0 %v1386, 73
        %v1934 = vpop.permute.xlu0 %1933
        %1935 = vrot.lane.b32.xlu0 %v1396, 73
        %v1936 = vpop.permute.xlu0 %1935
        %1937 = vrot.lane.b32.xlu0 %v1397, 73
        %v1938 = vpop.permute.xlu0 %1937
        %1939 = vrot.lane.b32.xlu0 %v1398, 73
        %v1940 = vpop.permute.xlu0 %1939
        %1941 = vrot.lane.b32.xlu0 %v1399, 73
        %v1942 = vpop.permute.xlu0 %1941
        %1943 = vrot.lane.b32.xlu0 %v1406, 73
        %v1944 = vpop.permute.xlu0 %1943
        %1945 = vrot.lane.b32.xlu0 %v1416, 73
        %v1946 = vpop.permute.xlu0 %1945
        %1947 = vrot.lane.b32.xlu0 %v1417, 73
        %v1948 = vpop.permute.xlu0 %1947
        %1949 = vrot.lane.b32.xlu0 %v1418, 73
        %v1950 = vpop.permute.xlu0 %1949
        %1951 = vrot.lane.b32.xlu0 %v1419, 73
        %v1952 = vpop.permute.xlu0 %1951
        %1953 = vrot.lane.b32.xlu0 %v1615, 73
        %v1954 = vpop.permute.xlu0 %1953
        %1955 = vrot.lane.b32.xlu0 %v1725, 73
        %v1956 = vpop.permute.xlu0 %1955
        %1957 = vrot.lane.b32.xlu0 %v1726, 73
        %v1958 = vpop.permute.xlu0 %1957
        %1959 = vrot.lane.b32.xlu0 %v1727, 73
        %v1960 = vpop.permute.xlu0 %1959
        %1961 = vrot.lane.b32.xlu0 %v1728, 73
        %v1962 = vpop.permute.xlu0 %1961
        %1963 = vrot.lane.b32.xlu0 %v1625, 73
        %v1964 = vpop.permute.xlu0 %1963
        %1965 = vrot.lane.b32.xlu0 %v1729, 73
        %v1966 = vpop.permute.xlu0 %1965
        %1967 = vrot.lane.b32.xlu0 %v1730, 73
        %v1968 = vpop.permute.xlu0 %1967
        %1969 = vrot.lane.b32.xlu0 %v1731, 73
        %v1970 = vpop.permute.xlu0 %1969
        %1971 = vrot.lane.b32.xlu0 %v1732, 73
        %v1972 = vpop.permute.xlu0 %1971
        %1973 = vrot.lane.b32.xlu0 %v1635, 73
        %v1974 = vpop.permute.xlu0 %1973
        %1975 = vrot.lane.b32.xlu0 %v1733, 73
        %v1976 = vpop.permute.xlu0 %1975
        %1977 = vrot.lane.b32.xlu0 %v1734, 73
        %v1978 = vpop.permute.xlu0 %1977
        %1979 = vrot.lane.b32.xlu0 %v1735, 73
        %v1980 = vpop.permute.xlu0 %1979
        %1981 = vrot.lane.b32.xlu0 %v1736, 73
        %v1982 = vpop.permute.xlu0 %1981
        %1983 = vrot.lane.b32.xlu0 %v1645, 73
        %v1984 = vpop.permute.xlu0 %1983
        %1985 = vrot.lane.b32.xlu0 %v1737, 73
        %v1986 = vpop.permute.xlu0 %1985
        %1987 = vrot.lane.b32.xlu0 %v1738, 73
        %v1988 = vpop.permute.xlu0 %1987
        %1989 = vrot.lane.b32.xlu0 %v1739, 73
        %v1990 = vpop.permute.xlu0 %1989
        %1991 = vrot.lane.b32.xlu0 %v1740, 73
        %v1992 = vpop.permute.xlu0 %1991
        %1993 = vrot.lane.b32.xlu0 %v1655, 73
        %v1994 = vpop.permute.xlu0 %1993
        %1995 = vrot.lane.b32.xlu0 %v1741, 73
        %v1996 = vpop.permute.xlu0 %1995
        %1997 = vrot.lane.b32.xlu0 %v1742, 73
        %v1998 = vpop.permute.xlu0 %1997
        %1999 = vrot.lane.b32.xlu0 %v1743, 73
        %v2000 = vpop.permute.xlu0 %1999
        %2001 = vrot.lane.b32.xlu0 %v1744, 73
        %v2002 = vpop.permute.xlu0 %2001
        %2003 = vrot.lane.b32.xlu0 %v1665, 73
        %v2004 = vpop.permute.xlu0 %2003
        %2005 = vrot.lane.b32.xlu0 %v1745, 73
        %v2006 = vpop.permute.xlu0 %2005
        %2007 = vrot.lane.b32.xlu0 %v1746, 73
        %v2008 = vpop.permute.xlu0 %2007
        %2009 = vrot.lane.b32.xlu0 %v1747, 73
        %v2010 = vpop.permute.xlu0 %2009
        %2011 = vrot.lane.b32.xlu0 %v1748, 73
        %v2012 = vpop.permute.xlu0 %2011
        %2013 = vrot.lane.b32.xlu0 %v1675, 73
        %v2014 = vpop.permute.xlu0 %2013
        %2015 = vrot.lane.b32.xlu0 %v1749, 73
        %v2016 = vpop.permute.xlu0 %2015
        %2017 = vrot.lane.b32.xlu0 %v1750, 73
        %v2018 = vpop.permute.xlu0 %2017
        %2019 = vrot.lane.b32.xlu0 %v1751, 73
        %v2020 = vpop.permute.xlu0 %2019
        %2021 = vrot.lane.b32.xlu0 %v1752, 73
        %v2022 = vpop.permute.xlu0 %2021
        %2023 = vrot.lane.b32.xlu0 %v1685, 73
        %v2024 = vpop.permute.xlu0 %2023
        %2025 = vrot.lane.b32.xlu0 %v1753, 73
        %v2026 = vpop.permute.xlu0 %2025
        %2027 = vrot.lane.b32.xlu0 %v1754, 73
        %v2028 = vpop.permute.xlu0 %2027
        %2029 = vrot.lane.b32.xlu0 %v1755, 73
        %v2030 = vpop.permute.xlu0 %2029
        %2031 = vrot.lane.b32.xlu0 %v1756, 73
        %v2032 = vpop.permute.xlu0 %2031
        %2033 = vrot.lane.b32.xlu0 %v1695, 73
        %v2034 = vpop.permute.xlu0 %2033
        %2035 = vrot.lane.b32.xlu0 %v1757, 73
        %v2036 = vpop.permute.xlu0 %2035
        %2037 = vrot.lane.b32.xlu0 %v1758, 73
        %v2038 = vpop.permute.xlu0 %2037
        %2039 = vrot.lane.b32.xlu0 %v1759, 73
        %v2040 = vpop.permute.xlu0 %2039
        %2041 = vrot.lane.b32.xlu0 %v1760, 73
        %v2042 = vpop.permute.xlu0 %2041
        %2043 = vrot.lane.b32.xlu0 %v1705, 73
        %v2044 = vpop.permute.xlu0 %2043
        %2045 = vrot.lane.b32.xlu0 %v1761, 73
        %v2046 = vpop.permute.xlu0 %2045
        %2047 = vrot.lane.b32.xlu0 %v1762, 73
        %v2048 = vpop.permute.xlu0 %2047
        %2049 = vrot.lane.b32.xlu0 %v1763, 73
        %v2050 = vpop.permute.xlu0 %2049
        %2051 = vrot.lane.b32.xlu0 %v1764, 73
        %v2052 = vpop.permute.xlu0 %2051
        %2053 = vrot.lane.b32.xlu0 %v1715, 73
        %v2054 = vpop.permute.xlu0 %2053
        %2055 = vrot.lane.b32.xlu0 %v1765, 73
        %v2056 = vpop.permute.xlu0 %2055
        %2057 = vrot.lane.b32.xlu0 %v1766, 73
        %v2058 = vpop.permute.xlu0 %2057
        %2059 = vrot.lane.b32.xlu0 %v1767, 73
        %v2060 = vpop.permute.xlu0 %2059
        %2061 = vrot.lane.b32.xlu0 %v1768, 73
        %v2062 = vpop.permute.xlu0 %2061
        %v2063 = vsel %vm904, %v1794, %v1796
        %v2064 = vsel %vm904, %v1796, %v1798
        %v2065 = vsel %vm904, %v1798, %v1800
        %v2066 = vsel %vm904, %v1800, %v1802
        %v2067 = vsel %vm904, %v1804, %v1806
        %v2068 = vsel %vm904, %v1806, %v1808
        %v2069 = vsel %vm904, %v1808, %v1810
        %v2070 = vsel %vm904, %v1810, %v1812
        %v2071 = vsel %vm904, %v1814, %v1816
        %v2072 = vsel %vm904, %v1816, %v1818
        %v2073 = vsel %vm904, %v1818, %v1820
        %v2074 = vsel %vm904, %v1820, %v1822
        %v2075 = vsel %vm904, %v1824, %v1826
        %v2076 = vsel %vm904, %v1826, %v1828
        %v2077 = vsel %vm904, %v1828, %v1830
        %v2078 = vsel %vm904, %v1830, %v1832
        %v2079 = vsel %vm904, %v1834, %v1836
        %v2080 = vsel %vm904, %v1836, %v1838
        %v2081 = vsel %vm904, %v1838, %v1840
        %v2082 = vsel %vm904, %v1840, %v1842
        %v2083 = vsel %vm904, %v1844, %v1846
        %v2084 = vsel %vm904, %v1846, %v1848
        %v2085 = vsel %vm904, %v1848, %v1850
        %v2086 = vsel %vm904, %v1850, %v1852
        %v2087 = vsel %vm904, %v1854, %v1856
        %v2088 = vsel %vm904, %v1856, %v1858
        %v2089 = vsel %vm904, %v1858, %v1860
        %v2090 = vsel %vm904, %v1860, %v1862
        %v2091 = vsel %vm904, %v1864, %v1866
        %v2092 = vsel %vm904, %v1866, %v1868
        %v2093 = vsel %vm904, %v1868, %v1870
        %v2094 = vsel %vm904, %v1870, %v1872
        %v2095 = vsel %vm904, %v1874, %v1876
        %v2096 = vsel %vm904, %v1876, %v1878
        %v2097 = vsel %vm904, %v1878, %v1880
        %v2098 = vsel %vm904, %v1880, %v1882
        %v2099 = vsel %vm904, %v1884, %v1886
        %v2100 = vsel %vm904, %v1886, %v1888
        %v2101 = vsel %vm904, %v1888, %v1890
        %v2102 = vsel %vm904, %v1890, %v1892
        %v2103 = vsel %vm904, %v1894, %v1896
        %v2104 = vsel %vm904, %v1896, %v1898
        %v2105 = vsel %vm904, %v1898, %v1900
        %v2106 = vsel %vm904, %v1900, %v1902
        %v2107 = vsel %vm904, %v1904, %v1906
        %v2108 = vsel %vm904, %v1906, %v1908
        %v2109 = vsel %vm904, %v1908, %v1910
        %v2110 = vsel %vm904, %v1910, %v1912
        %v2111 = vsel %vm904, %v1914, %v1916
        %v2112 = vsel %vm904, %v1916, %v1918
        %v2113 = vsel %vm904, %v1918, %v1920
        %v2114 = vsel %vm904, %v1920, %v1922
        %v2115 = vsel %vm904, %v1924, %v1926
        %v2116 = vsel %vm904, %v1926, %v1928
        %v2117 = vsel %vm904, %v1928, %v1930
        %v2118 = vsel %vm904, %v1930, %v1932
        %v2119 = vsel %vm904, %v1934, %v1936
        %v2120 = vsel %vm904, %v1936, %v1938
        %v2121 = vsel %vm904, %v1938, %v1940
        %v2122 = vsel %vm904, %v1940, %v1942
        %v2123 = vsel %vm904, %v1944, %v1946
        %v2124 = vsel %vm904, %v1946, %v1948
        %v2125 = vsel %vm904, %v1948, %v1950
        %v2126 = vsel %vm904, %v1950, %v1952
        %v2127 = vsel %vm904, %v1954, %v1956
        %v2128 = vsel %vm904, %v1956, %v1958
        %v2129 = vsel %vm904, %v1958, %v1960
        %v2130 = vsel %vm904, %v1960, %v1962
        %v2131 = vsel %vm904, %v1964, %v1966
        %v2132 = vsel %vm904, %v1966, %v1968
        %v2133 = vsel %vm904, %v1968, %v1970
        %v2134 = vsel %vm904, %v1970, %v1972
        %v2135 = vsel %vm904, %v1974, %v1976
        %v2136 = vsel %vm904, %v1976, %v1978
        %v2137 = vsel %vm904, %v1978, %v1980
        %v2138 = vsel %vm904, %v1980, %v1982
        %v2139 = vsel %vm904, %v1984, %v1986
        %v2140 = vsel %vm904, %v1986, %v1988
        %v2141 = vsel %vm904, %v1988, %v1990
        %v2142 = vsel %vm904, %v1990, %v1992
        %v2143 = vsel %vm904, %v1994, %v1996
        %v2144 = vsel %vm904, %v1996, %v1998
        %v2145 = vsel %vm904, %v1998, %v2000
        %v2146 = vsel %vm904, %v2000, %v2002
        %v2147 = vsel %vm904, %v2004, %v2006
        %v2148 = vsel %vm904, %v2006, %v2008
        %v2149 = vsel %vm904, %v2008, %v2010
        %v2150 = vsel %vm904, %v2010, %v2012
        %v2151 = vsel %vm904, %v2014, %v2016
        %v2152 = vsel %vm904, %v2016, %v2018
        %v2153 = vsel %vm904, %v2018, %v2020
        %v2154 = vsel %vm904, %v2020, %v2022
        %v2155 = vsel %vm904, %v2024, %v2026
        %v2156 = vsel %vm904, %v2026, %v2028
        %v2157 = vsel %vm904, %v2028, %v2030
        %v2158 = vsel %vm904, %v2030, %v2032
        %v2159 = vsel %vm904, %v2034, %v2036
        %v2160 = vsel %vm904, %v2036, %v2038
        %v2161 = vsel %vm904, %v2038, %v2040
        %v2162 = vsel %vm904, %v2040, %v2042
        %v2163 = vsel %vm904, %v2044, %v2046
        %v2164 = vsel %vm904, %v2046, %v2048
        %v2165 = vsel %vm904, %v2048, %v2050
        %v2166 = vsel %vm904, %v2050, %v2052
        %v2167 = vsel %vm904, %v2054, %v2056
        %v2168 = vsel %vm904, %v2056, %v2058
        %v2169 = vsel %vm904, %v2058, %v2060
        %v2170 = vsel %vm904, %v2060, %v2062
        %vm2279 = vcmask 392192
        %v2281 = vsel %vm2279, %v1784, 0
        %2283 = vmatprep.subr.bf16.mxu0 %v2064
        %2284 = vmatpush1.bf16.msra.mxu0 %v2063
        %2285 = vmatprep.subr.bf16.mxu0 %v2068
        %2286 = vmatpush1.bf16.msra.mxu0 %v2067
        %2287 = vmatprep.subr.bf16.mxu0 %v2072
        %2288 = vmatpush1.bf16.msra.mxu0 %v2071
        %2289 = vmatprep.subr.bf16.mxu0 %v2076
        %2290 = vmatpush1.bf16.msra.mxu0 %v2075
        %2291 = vmatprep.subr.bf16.mxu0 %v2080
        %2292 = vmatpush1.bf16.msra.mxu0 %v2079
        %2293 = vmatprep.subr.bf16.mxu0 %v2084
        %2294 = vmatpush1.bf16.msra.mxu0 %v2083
        %2295 = vmatprep.subr.bf16.mxu0 %v2088
        %2296 = vmatpush1.bf16.msra.mxu0 %v2087
        %2297 = vmatprep.subr.bf16.mxu0 %v2092
        %2298 = vmatpush1.bf16.msra.mxu0 %v2091
        %2299 = vmatprep.subr.bf16.mxu0 %v2096
        %2300 = vmatpush1.bf16.msra.mxu0 %v2095
        %2301 = vmatprep.subr.bf16.mxu0 %v2100
        %2302 = vmatpush1.bf16.msra.mxu0 %v2099
        %2303 = vmatprep.subr.bf16.mxu0 %v2104
        %2304 = vmatpush1.bf16.msra.mxu0 %v2103
        %2305 = vmatprep.subr.bf16.mxu0 %v2108
        %2306 = vmatpush1.bf16.msra.mxu0 %v2107
        %2307 = vmatprep.subr.bf16.mxu0 %v2112
        %2308 = vmatpush1.bf16.msra.mxu0 %v2111
        %2309 = vmatprep.subr.bf16.mxu0 %v2116
        %2310 = vmatpush1.bf16.msra.mxu0 %v2115
        %2311 = vmatprep.subr.bf16.mxu0 %v2120
        %2312 = vmatpush1.bf16.msra.mxu0 %v2119
        %2313 = vmatprep.subr.bf16.mxu0 %v2124
        %2314 = vmatpush1.bf16.msra.mxu0 %v2123
        %2315 = vmatprep.mubr.bf16.mxu0 %v1782
        %2316 = vmatmul.mubr.bf16.gmra.mrb[0].mxu0 %v1781
        %v2317 = vpop.f32.mrb[0].mxu0
        %v2318 = vadd.f32 0.0, %v2317
        %v2319 = vpop.f32.mrb[0].mxu0
        %v2320 = vadd.f32 0.0, %v2319
        %v2321 = vpop.f32.mrb[0].mxu0
        %v2322 = vadd.f32 0.0, %v2321
        %v2323 = vpop.f32.mrb[0].mxu0
        %v2324 = vadd.f32 0.0, %v2323
        %2325 = vdwg.mxu0
        %2326 = vmatprep.subr.bf16.mxu0 %v2128
        %2327 = vmatpush1.bf16.msra.mxu0 %v2127
        %2328 = vmatprep.subr.bf16.mxu0 %v2132
        %2329 = vmatpush1.bf16.msra.mxu0 %v2131
        %2330 = vmatprep.subr.bf16.mxu0 %v2136
        %2331 = vmatpush1.bf16.msra.mxu0 %v2135
        %2332 = vmatprep.subr.bf16.mxu0 %v2140
        %2333 = vmatpush1.bf16.msra.mxu0 %v2139
        %2334 = vmatprep.subr.bf16.mxu0 %v2144
        %2335 = vmatpush1.bf16.msra.mxu0 %v2143
        %2336 = vmatprep.subr.bf16.mxu0 %v2148
        %2337 = vmatpush1.bf16.msra.mxu0 %v2147
        %2338 = vmatprep.subr.bf16.mxu0 %v2152
        %2339 = vmatpush1.bf16.msra.mxu0 %v2151
        %2340 = vmatprep.subr.bf16.mxu0 %v2156
        %2341 = vmatpush1.bf16.msra.mxu0 %v2155
        %2342 = vmatprep.subr.bf16.mxu0 %v2160
        %2343 = vmatpush1.bf16.msra.mxu0 %v2159
        %2344 = vmatprep.subr.bf16.mxu0 %v2164
        %2345 = vmatpush1.bf16.msra.mxu0 %v2163
        %2346 = vmatprep.subr.bf16.mxu0 %v2168
        %2347 = vmatpush1.bf16.msra.mxu0 %v2167
        %2348 = vmatprep.subr.bf16.mxu0 0
        %2349 = vmatpush1.bf16.msra.mxu0 0
        %2350 = vmatprep.subr.bf16.mxu0 0
        %2351 = vmatpush1.bf16.msra.mxu0 0
        %2352 = vmatprep.subr.bf16.mxu0 0
        %2353 = vmatpush1.bf16.msra.mxu0 0
        %2354 = vmatprep.subr.bf16.mxu0 0
        %2355 = vmatpush1.bf16.msra.mxu0 0
        %2356 = vmatprep.subr.bf16.mxu0 0
        %2357 = vmatpush1.bf16.msra.mxu0 0
        %2358 = vmatprep.mubr.bf16.mxu0 %v2281
        %2359 = vmatmul.mubr.bf16.gmra.mrb[0].mxu0 %v1783
        %v2360 = vpop.f32.mrb[0].mxu0
        %v2361 = vadd.f32 %v2318, %v2360
        %v2362 = vpop.f32.mrb[0].mxu0
        %v2363 = vadd.f32 %v2320, %v2362
        %v2364 = vpop.f32.mrb[0].mxu0
        %v2365 = vadd.f32 %v2322, %v2364
        %v2366 = vpop.f32.mrb[0].mxu0
        %v2367 = vadd.f32 %v2324, %v2366
        %2368 = vdwg.mxu0
        %2369 = vmatprep.subr.bf16.mxu0 %v2066
        %2370 = vmatpush1.bf16.msra.mxu0 %v2065
        %2371 = vmatprep.subr.bf16.mxu0 %v2070
        %2372 = vmatpush1.bf16.msra.mxu0 %v2069
        %2373 = vmatprep.subr.bf16.mxu0 %v2074
        %2374 = vmatpush1.bf16.msra.mxu0 %v2073
        %2375 = vmatprep.subr.bf16.mxu0 %v2078
        %2376 = vmatpush1.bf16.msra.mxu0 %v2077
        %2377 = vmatprep.subr.bf16.mxu0 %v2082
        %2378 = vmatpush1.bf16.msra.mxu0 %v2081
        %2379 = vmatprep.subr.bf16.mxu0 %v2086
        %2380 = vmatpush1.bf16.msra.mxu0 %v2085
        %2381 = vmatprep.subr.bf16.mxu0 %v2090
        %2382 = vmatpush1.bf16.msra.mxu0 %v2089
        %2383 = vmatprep.subr.bf16.mxu0 %v2094
        %2384 = vmatpush1.bf16.msra.mxu0 %v2093
        %2385 = vmatprep.subr.bf16.mxu0 %v2098
        %2386 = vmatpush1.bf16.msra.mxu0 %v2097
        %2387 = vmatprep.subr.bf16.mxu0 %v2102
        %2388 = vmatpush1.bf16.msra.mxu0 %v2101
        %2389 = vmatprep.subr.bf16.mxu0 %v2106
        %2390 = vmatpush1.bf16.msra.mxu0 %v2105
        %2391 = vmatprep.subr.bf16.mxu0 %v2110
        %2392 = vmatpush1.bf16.msra.mxu0 %v2109
        %2393 = vmatprep.subr.bf16.mxu0 %v2114
        %2394 = vmatpush1.bf16.msra.mxu0 %v2113
        %2395 = vmatprep.subr.bf16.mxu0 %v2118
        %2396 = vmatpush1.bf16.msra.mxu0 %v2117
        %2397 = vmatprep.subr.bf16.mxu0 %v2122
        %2398 = vmatpush1.bf16.msra.mxu0 %v2121
        %2399 = vmatprep.subr.bf16.mxu0 %v2126
        %2400 = vmatpush1.bf16.msra.mxu0 %v2125
        %2401 = vmatprep.mubr.bf16.mxu0 %v1782
        %2402 = vmatmul.mubr.bf16.gmra.mrb[0].mxu0 %v1781
        %v2403 = vpop.f32.mrb[0].mxu0
        %v2404 = vadd.f32 0.0, %v2403
        %v2405 = vpop.f32.mrb[0].mxu0
        %v2406 = vadd.f32 0.0, %v2405
        %v2407 = vpop.f32.mrb[0].mxu0
        %v2408 = vadd.f32 0.0, %v2407
        %v2409 = vpop.f32.mrb[0].mxu0
        %v2410 = vadd.f32 0.0, %v2409
        %2411 = vdwg.mxu0
        %2412 = vmatprep.subr.bf16.mxu0 %v2130
        %2413 = vmatpush1.bf16.msra.mxu0 %v2129
        %2414 = vmatprep.subr.bf16.mxu0 %v2134
        %2415 = vmatpush1.bf16.msra.mxu0 %v2133
        %2416 = vmatprep.subr.bf16.mxu0 %v2138
        %2417 = vmatpush1.bf16.msra.mxu0 %v2137
        %2418 = vmatprep.subr.bf16.mxu0 %v2142
        %2419 = vmatpush1.bf16.msra.mxu0 %v2141
        %2420 = vmatprep.subr.bf16.mxu0 %v2146
        %2421 = vmatpush1.bf16.msra.mxu0 %v2145
        %2422 = vmatprep.subr.bf16.mxu0 %v2150
        %2423 = vmatpush1.bf16.msra.mxu0 %v2149
        %2424 = vmatprep.subr.bf16.mxu0 %v2154
        %2425 = vmatpush1.bf16.msra.mxu0 %v2153
        %2426 = vmatprep.subr.bf16.mxu0 %v2158
        %2427 = vmatpush1.bf16.msra.mxu0 %v2157
        %2428 = vmatprep.subr.bf16.mxu0 %v2162
        %2429 = vmatpush1.bf16.msra.mxu0 %v2161
        %2430 = vmatprep.subr.bf16.mxu0 %v2166
        %2431 = vmatpush1.bf16.msra.mxu0 %v2165
        %2432 = vmatprep.subr.bf16.mxu0 %v2170
        %2433 = vmatpush1.bf16.msra.mxu0 %v2169
        %2434 = vmatprep.subr.bf16.mxu0 0
        %2435 = vmatpush1.bf16.msra.mxu0 0
        %2436 = vmatprep.subr.bf16.mxu0 0
        %2437 = vmatpush1.bf16.msra.mxu0 0
        %2438 = vmatprep.subr.bf16.mxu0 0
        %2439 = vmatpush1.bf16.msra.mxu0 0
        %2440 = vmatprep.subr.bf16.mxu0 0
        %2441 = vmatpush1.bf16.msra.mxu0 0
        %2442 = vmatprep.subr.bf16.mxu0 0
        %2443 = vmatpush1.bf16.msra.mxu0 0
        %2444 = vmatprep.mubr.bf16.mxu0 %v2281
        %2445 = vmatmul.mubr.bf16.gmra.mrb[0].mxu0 %v1783
        %v2446 = vpop.f32.mrb[0].mxu0
        %v2447 = vadd.f32 %v2404, %v2446
        %v2448 = vpop.f32.mrb[0].mxu0
        %v2449 = vadd.f32 %v2406, %v2448
        %v2450 = vpop.f32.mrb[0].mxu0
        %v2451 = vadd.f32 %v2408, %v2450
        %v2452 = vpop.f32.mrb[0].mxu0
        %v2453 = vadd.f32 %v2410, %v2452
        %2454 = vdwg.mxu0
        %2456 = vset.pattern.permute.xlu0 0
        %2457 = vperm.xlu0 %2456, %v276
        %v2458 = vpop.permute.xlu0 %2457
        %2461 = vset.pattern.permute.xlu0 0
        %2462 = vperm.xlu0 %2461, %v277
        %v2463 = vpop.permute.xlu0 %2462
        %v2465 = vmul.f32 %v2361, %v2458
        %v2466 = vmul.f32 %v2363, %v2458
        %v2467 = vmul.f32 %v2447, %v2458
        %v2468 = vmul.f32 %v2449, %v2458
        %v2469 = vmul.f32 %v2365, %v2463
        %v2470 = vmul.f32 %v2367, %v2463
        %v2471 = vmul.f32 %v2451, %v2463
        %v2472 = vmul.f32 %v2453, %v2463
        %2474 = vset.pattern.permute.xlu0 0
        %2475 = vperm.xlu0 %2474, %v278
        %v2476 = vpop.permute.xlu0 %2475
        %2479 = vset.pattern.permute.xlu0 0
        %2480 = vperm.xlu0 %2479, %v279
        %v2481 = vpop.permute.xlu0 %2480
        %v2483 = vadd.f32 %v2465, %v2476
        %v2484 = vadd.f32 %v2466, %v2476
        %v2485 = vadd.f32 %v2467, %v2476
        %v2486 = vadd.f32 %v2468, %v2476
        %v2487 = vadd.f32 %v2469, %v2481
        %v2488 = vadd.f32 %v2470, %v2481
        %v2489 = vadd.f32 %v2471, %v2481
        %v2490 = vadd.f32 %v2472, %v2481
        %v2491 = vmax.f32 %v2483, 0.0
        %v2492 = vmax.f32 %v2484, 0.0
        %v2493 = vmax.f32 %v2485, 0.0
        %v2494 = vmax.f32 %v2486, 0.0
        %v2495 = vmax.f32 %v2487, 0.0
        %v2496 = vmax.f32 %v2488, 0.0
        %v2497 = vmax.f32 %v2489, 0.0
        %v2498 = vmax.f32 %v2490, 0.0
        %v2499 = vpack.c.bf16 %v2495, %v2491
        %v2500 = vpack.c.bf16 %v2496, %v2492
        %v2501 = vpack.c.bf16 %v2497, %v2493
        %v2502 = vpack.c.bf16 %v2498, %v2494
        %v2507 = vunpack.c.l.b16 %v2499
        %v2508 = vunpack.c.l.b16 %v2500
        %v2509 = vunpack.c.l.b16 %v2501
        %v2510 = vunpack.c.l.b16 %v2502
        %v2511 = vunpack.c.h.b16 %v2499
        %v2512 = vunpack.c.h.b16 %v2500
        %v2513 = vunpack.c.h.b16 %v2501
        %v2514 = vunpack.c.h.b16 %v2502
        %v2515 = vpack.c.b16 %v2508, %v2507
        %v2516 = vpack.c.b16 %v2510, %v2509
        %v2517 = vpack.c.b16 %v2512, %v2511
        %v2518 = vpack.c.b16 %v2514, %v2513
        %2523 = vst [vmem:[%s217] sm:$0xff] %v2515
        %2524 = vst [vmem:[%s217 + $0x8] sm:$0xff] %v2516
        %2525 = vst [vmem:[%s217 + $0x10] sm:$0xff] %v2517
        %2526 = vst [vmem:[%s217 + $0x18] sm:$0xff] %v2518
        %s2527 = sand.u32 %s137, 1
        %s2528 = scalar_lea.sflag [#allocation6], %s2527
        %s2529 = sand.u32 %s137, 1
        %s2530 = smul.addr %s2529, 32
        %s2531 = scalar_lea.vmem [#allocation5], %s2530
        // Predicated region
        $region41: #{tpu_custom_call.1} parent=39 // pred_check
          %p2532 = pneg %p147
        $region42: #{tpu_custom_call.1} parent=39 // pred_check_branch
          %2534 = sbr.rel (%p2532) target = $region44
        $region43: #{tpu_custom_call.1} parent=39 // pred_region
          %s2536 = ssub.s32 512, 512
          %2537 = vsyncadd %s2528, %s2536
          %s2538 = smul.addr %s19, 8
          %s2539 = smul.addr %s2538, 64
          %s2540 = scalar_lea.hbm %s5, %s2539
          %s2541 = sshll.u32 %s2531, 4
          %s2542 = int_to_ptr.vmem [resolvable:$true] %s2541
          %2547 = dma.vmem_to_hbm [thread:$0]  %s2542, 512, %s2540, %s2528, 256, 256, 16
        $region44: #{tpu_custom_call.1} parent=39 // pred_fallthru
          _
      $region40: #{tpu_custom_call.1} parent=5 // pred_fallthru
        _
      %p2548 = scmp.le.s32.totalorder 2, %s14
      // Predicated region
      $region45: #{tpu_custom_call.1} parent=5 // pred_check
        %p2549 = pneg %p2548
      $region46: #{tpu_custom_call.1} parent=5 // pred_check_branch
        %2551 = sbr.rel (%p2549) target = $region48
      $region47: #{tpu_custom_call.1} parent=5 // pred_region
        %s2552 = ssub.s32 %s14, 2
        // Predicated region
        $region49: #{tpu_custom_call.1} parent=47 // pred_check
          %p2553 = pneg %p153
        $region50: #{tpu_custom_call.1} parent=47 // pred_check_branch
          %2555 = sbr.rel (%p2553) target = $region52
        $region51: #{tpu_custom_call.1} parent=47 // pred_region
          %s2556 = sand.u32 %s138, 1
          %s2557 = scalar_lea.sflag [#allocation6], %s2556
          %s2558 = sand.u32 %s138, 1
          %s2559 = smul.addr %s2558, 32
          %s2560 = scalar_lea.vmem [#allocation5], %s2559
          %2561 = dma.done %s2557, 512
        $region52: #{tpu_custom_call.1} parent=47 // pred_fallthru
          _
      $region48: #{tpu_custom_call.1} parent=5 // pred_fallthru
        _
    $region6: #{tpu_custom_call.1} parent=1 // loop_footer
      %s18 = sadd.s32 1, %s14
    $region7: #{tpu_custom_call.1} parent=1 // loop_footer_branch
      %13 = sbr.rel target = $region3
    $region8: #{tpu_custom_call.1} parent=1 // loop_exit
      _
    %2562 = vsyncpa [#allocation6], 1
    %s2563 = scalar_lea.sflag [#allocation6], 1
    %2564 = vsyncpa %s2563, 1

</llo_original>
